<compile_context>
chip_gen: v7x
topology: tpu7x:2x2x1
jax: 0.10.0
libtpu: 0.0.40
codegen_flags: <defaults>
</compile_context>

<pallas_src>
import functools
import math

import jax
import jax.numpy as jnp
from jax.experimental import pallas as pl
from jax.experimental.pallas import tpu as pltpu


def _spblock_kernel(x_ref, w1_ref, b1_ref, w2_ref, b2_ref, w3_ref, b3_ref,
                    o_ref, *, H, W):
    """One grid step = one block of NB images.

    x_ref:  (NB, Cin, H, W)   input images (NCHW, as produced by the framework)
    w1_ref: (3, Cin, mid)     conv1 (3x1) taps, BN1 scale folded in
    b1_ref: (1, mid)          folded BN1 bias
    w2_ref: (3, Cin, mid)     conv2 (1x3) taps, BN2 scale folded in
    b2_ref: (1, mid)          folded BN2 bias
    w3_ref: (mid, Cout)       conv3 (1x1) weight (transposed)
    b3_ref: (Cout, 1)         conv3 bias (column vector for lane-dense epilogue)
    o_ref:  (NB, Cout, H*W)   lane-dense output block (256 lanes)
    """
    x = x_ref[...].astype(jnp.float32)
    nb = x.shape[0]
    mid = w1_ref.shape[-1]

    # ---- strip pooling (adaptive avg pool to (H,1) and (1,W)) --------------
    s1 = jnp.sum(x, axis=3) * (1.0 / W)            # (NB, Cin, H)  mean over W
    s2 = jnp.sum(x, axis=2) * (1.0 / H)            # (NB, Cin, W)  mean over H
    s1 = jnp.transpose(s1, (0, 2, 1))              # (NB, H, Cin)  channel-last
    s2 = jnp.transpose(s2, (0, 2, 1))              # (NB, W, Cin)

    # ---- 3-tap strip conv (pad 1) + folded BN, batched over NB -------------
    def strip_conv(s, w_ref, b_ref):
        n, L, cin = s.shape
        zeros = jnp.zeros((n, 1, cin), jnp.float32)
        sp = jnp.concatenate([zeros, s, zeros], axis=1)          # (n, L+2, cin)
        acc = jnp.zeros((n, L, w_ref.shape[-1]), jnp.float32)
        for k in range(3):                                       # 3 taps
            acc = acc + jnp.dot(sp[:, k:k + L, :], w_ref[k],
                                preferred_element_type=jnp.float32)
        return acc + b_ref[...]                                  # (n, L, mid)

    y1 = strip_conv(s1, w1_ref, b1_ref)            # (NB, H, mid)
    y2 = strip_conv(s2, w2_ref, b2_ref)            # (NB, W, mid)

    # ---- broadcast-add + ReLU (the expand(-1,-1,h,w) never hits HBM) -------
    z = jnp.maximum(y1[:, :, None, :] + y2[:, None, :, :], 0.0)  # (NB,H,W,mid)
    z = z.reshape(nb, H * W, mid)                                # lane dim kept

    # ---- 1x1 conv as ONE dot over all NB*H*W rows, bias + sigmoid ----------
    out = jnp.dot(z, w3_ref[...], preferred_element_type=jnp.float32)
    out = jnp.transpose(out, (0, 2, 1))            # (NB, Cout, H*W) lane-dense
    out = out + b3_ref[...]
    out = 1.0 / (1.0 + jnp.exp(-out))              # sigmoid (exact)
    o_ref[...] = out.astype(o_ref.dtype)


def spblock_forward(x, w1, g1, be1, m1, v1, w2, g2, be2, m2, v2, w3, b3,
                    *, eps=1e-5, batch_block=None):
    """SPBlock forward.  x: (N, Cin, H, W) f32.  Returns (N, Cout, H, W)."""
    N, Cin, H, W = x.shape
    mid = w1.shape[0]
    cout = w3.shape[0]

    # ---- fold BN (inference / running stats) into the strip-conv weights ---
    sc1 = g1 / jnp.sqrt(v1 + eps)
    sc2 = g2 / jnp.sqrt(v2 + eps)
    w1_taps = jnp.transpose(w1[:, :, :, 0] * sc1[:, None, None], (2, 1, 0))
    w2_taps = jnp.transpose(w2[:, :, 0, :] * sc2[:, None, None], (2, 1, 0))
    b1v = (be1 - m1 * sc1).reshape(1, mid).astype(jnp.float32)
    b2v = (be2 - m2 * sc2).reshape(1, mid).astype(jnp.float32)
    w3_mat = jnp.transpose(w3[:, :, 0, 0], (1, 0)).astype(jnp.float32)
    b3v = b3.reshape(cout, 1).astype(jnp.float32)

    nb = N if batch_block is None else batch_block
    assert N % nb == 0, "batch_block must divide N"
    grid = (N // nb,)

    kernel_fn = functools.partial(_spblock_kernel, H=H, W=W)

    out_flat = pl.pallas_call(
        kernel_fn,
        out_shape=jax.ShapeDtypeStruct((N, cout, H * W), jnp.float32),
        grid_spec=pltpu.PrefetchScalarGridSpec(
            num_scalar_prefetch=0,
            grid=grid,
            in_specs=[
                pl.BlockSpec((nb, Cin, H, W), lambda i: (i, 0, 0, 0)),
                pl.BlockSpec((3, Cin, mid), lambda i: (0, 0, 0)),
                pl.BlockSpec((1, mid), lambda i: (0, 0)),
                pl.BlockSpec((3, Cin, mid), lambda i: (0, 0, 0)),
                pl.BlockSpec((1, mid), lambda i: (0, 0)),
                pl.BlockSpec((mid, cout), lambda i: (0, 0)),
                pl.BlockSpec((cout, 1), lambda i: (0, 0)),
            ],
            out_specs=pl.BlockSpec((nb, cout, H * W), lambda i: (i, 0, 0)),
        ),
        compiler_params=pltpu.CompilerParams(
            dimension_semantics=("parallel",)),
    )(x.astype(jnp.float32), w1_taps.astype(jnp.float32), b1v,
      w2_taps.astype(jnp.float32), b2v, w3_mat, b3v)

    # Free (bitcast) reshape back to NCHW.
    return out_flat.reshape(N, cout, H, W)


def _reference(x, w1, g1, be1, m1, v1, w2, g2, be2, m2, v2, w3, b3, *, eps=1e-5):
    """Pure-JAX reference mirroring the PyTorch SPBlock (eval-mode BN)."""
    N, C, H, W = x.shape
    dn = ("NCHW", "OIHW", "NCHW")
    x1 = jnp.mean(x, axis=3, keepdims=True)                      # (N,C,H,1)
    x1 = jax.lax.conv_general_dilated(x1, w1, (1, 1), ((1, 1), (0, 0)),
                                      dimension_numbers=dn)
    sc1 = g1 / jnp.sqrt(v1 + eps)
    x1 = x1 * sc1[None, :, None, None] + (be1 - m1 * sc1)[None, :, None, None]
    x1 = jnp.broadcast_to(x1, (N, w1.shape[0], H, W))
    x2 = jnp.mean(x, axis=2, keepdims=True)                      # (N,C,1,W)
    x2 = jax.lax.conv_general_dilated(x2, w2, (1, 1), ((0, 0), (1, 1)),
                                      dimension_numbers=dn)
    sc2 = g2 / jnp.sqrt(v2 + eps)
    x2 = x2 * sc2[None, :, None, None] + (be2 - m2 * sc2)[None, :, None, None]
    x2 = jnp.broadcast_to(x2, (N, w2.shape[0], H, W))
    y = jnp.maximum(x1 + x2, 0.0)
    y = jax.lax.conv_general_dilated(y, w3, (1, 1), ((0, 0), (0, 0)),
                                     dimension_numbers=dn)
    y = y + b3[None, :, None, None]
    return jax.nn.sigmoid(y)


if __name__ == "__main__":
    key = jax.random.PRNGKey(0)
    keys = jax.random.split(key, 8)

    N, Cin, H, W = 2, 4, 16, 16
    Cout = 8                      # outplanes (= midplanes in SPBlock)
    mid = Cout

    x = jax.random.normal(keys[0], (N, Cin, H, W), dtype=jnp.float32)

    def conv_init(k, shape):      # kaiming_uniform-ish, deterministic
        fan_in = shape[1] * shape[2] * shape[3]
        bound = 1.0 / math.sqrt(fan_in)
        return jax.random.uniform(k, shape, jnp.float32, -bound, bound)

    w1 = conv_init(keys[1], (mid, Cin, 3, 1))
    w2 = conv_init(keys[2], (mid, Cin, 1, 3))
    w3 = conv_init(keys[3], (Cout, mid, 1, 1))
    b3 = jax.random.uniform(keys[4], (Cout,), jnp.float32,
                            -1.0 / math.sqrt(mid), 1.0 / math.sqrt(mid))

    def bn_params(k):
        kg, kb, km, kv = jax.random.split(k, 4)
        g = 1.0 + 0.1 * jax.random.normal(kg, (mid,), jnp.float32)
        b = 0.1 * jax.random.normal(kb, (mid,), jnp.float32)
        m = 0.1 * jax.random.normal(km, (mid,), jnp.float32)
        v = jnp.abs(1.0 + 0.1 * jax.random.normal(kv, (mid,), jnp.float32))
        return g, b, m, v

    g1, be1, m1, v1 = bn_params(keys[5])
    g2, be2, m2, v2 = bn_params(keys[6])

    out = spblock_forward(x, w1, g1, be1, m1, v1,
                          w2, g2, be2, m2, v2, w3, b3)
    out = jax.block_until_ready(out)

    ref = _reference(x, w1, g1, be1, m1, v1, w2, g2, be2, m2, v2, w3, b3)
    assert out.shape == (N, Cout, H, W)
    err = float(jnp.max(jnp.abs(out - ref)))
    assert err < 1e-4, f"mismatch vs reference: {err}"

    print("KERNEL_OK")
</pallas_src>

<mosaic_0001>
module attributes {stable_mosaic.version = 11 : i64} {
  func.func @_spblock_kernel(%arg0: i32, %arg1: memref<2x4x16x16xf32, #tpu.memory_space<vmem>>, %arg2: memref<3x4x8xf32, #tpu.memory_space<vmem>>, %arg3: memref<1x8xf32, #tpu.memory_space<vmem>>, %arg4: memref<3x4x8xf32, #tpu.memory_space<vmem>>, %arg5: memref<1x8xf32, #tpu.memory_space<vmem>>, %arg6: memref<8x8xf32, #tpu.memory_space<vmem>>, %arg7: memref<8x1xf32, #tpu.memory_space<vmem>>, %arg8: memref<2x8x256xf32, #tpu.memory_space<vmem>>) attributes {dimension_semantics = [#tpu.dimension_semantics<parallel>], iteration_bounds = array<i64: 1>, scalar_prefetch = 0 : i64, scratch_operands = 0 : i64, tpu.core_type = #tpu.core_type<tc>, window_params = [{transform_indices = @transform_0, window_bounds = array<i64: 2, 4, 16, 16>}, {pipeline_mode = #tpu.pipeline_mode<synchronous>, transform_indices = @transform_1, window_bounds = array<i64: 3, 4, 8>}, {pipeline_mode = #tpu.pipeline_mode<synchronous>, transform_indices = @transform_2, window_bounds = array<i64: 1, 8>}, {pipeline_mode = #tpu.pipeline_mode<synchronous>, transform_indices = @transform_3, window_bounds = array<i64: 3, 4, 8>}, {pipeline_mode = #tpu.pipeline_mode<synchronous>, transform_indices = @transform_4, window_bounds = array<i64: 1, 8>}, {pipeline_mode = #tpu.pipeline_mode<synchronous>, transform_indices = @transform_5, window_bounds = array<i64: 8, 8>}, {pipeline_mode = #tpu.pipeline_mode<synchronous>, transform_indices = @transform_6, window_bounds = array<i64: 8, 1>}, {transform_indices = @transform_7, window_bounds = array<i64: 2, 8, 256>}]} {
    %c0 = arith.constant 0 : index
    %c0_0 = arith.constant 0 : index
    %c0_1 = arith.constant 0 : index
    %c0_2 = arith.constant 0 : index
    %0 = vector.load %arg1[%c0, %c0_0, %c0_1, %c0_2] : memref<2x4x16x16xf32, #tpu.memory_space<vmem>>, vector<2x4x16x16xf32>
    %cst = arith.constant dense<0.000000e+00> : vector<2x4x16xf32>
    %1 = vector.multi_reduction <add>, %0, %cst [3] : vector<2x4x16x16xf32> to vector<2x4x16xf32>
    %cst_3 = arith.constant 6.250000e-02 : f32
    %2 = vector.broadcast %cst_3 : f32 to vector<2x4x16xf32>
    %3 = arith.mulf %1, %2 : vector<2x4x16xf32>
    %cst_4 = arith.constant dense<0.000000e+00> : vector<2x4x16xf32>
    %4 = vector.multi_reduction <add>, %0, %cst_4 [2] : vector<2x4x16x16xf32> to vector<2x4x16xf32>
    %cst_5 = arith.constant 6.250000e-02 : f32
    %5 = vector.broadcast %cst_5 : f32 to vector<2x4x16xf32>
    %6 = arith.mulf %4, %5 : vector<2x4x16xf32>
    %7 = tpu.transpose %3, [0, 2, 1] : vector<2x4x16xf32> -> vector<2x16x4xf32>
    %8 = tpu.transpose %6, [0, 2, 1] : vector<2x4x16xf32> -> vector<2x16x4xf32>
    %cst_6 = arith.constant 0.000000e+00 : f32
    %9 = vector.broadcast %cst_6 : f32 to vector<2x1x4xf32>
    %10 = tpu.concatenate %9, %7, %9 in 1 : vector<2x1x4xf32>, vector<2x16x4xf32>, vector<2x1x4xf32> -> vector<2x18x4xf32>
    %cst_7 = arith.constant 0.000000e+00 : f32
    %11 = vector.broadcast %cst_7 : f32 to vector<2x16x8xf32>
    %12 = vector.extract_strided_slice %10 {offsets = [0, 0, 0], sizes = [2, 16, 4], strides = [1, 1, 1]} : vector<2x18x4xf32> to vector<2x16x4xf32>
    %c0_8 = arith.constant 0 : index
    %c0_9 = arith.constant 0 : index
    %c0_10 = arith.constant 0 : index
    %13 = vector.load %arg2[%c0_8, %c0_9, %c0_10] : memref<3x4x8xf32, #tpu.memory_space<vmem>>, vector<1x4x8xf32>
    %14 = vector.shape_cast %13 : vector<1x4x8xf32> to vector<4x8xf32>
    %cst_11 = arith.constant dense<0.000000e+00> : vector<2x16x8xf32>
    %15 = tpu.matmul %12, %14, %cst_11 {dimension_numbers = #tpu.dot_dimension_numbers<[2], [0], [0, 1], [1], [0, 0, 0, 1, 1, 1], [], []>} : vector<2x16x4xf32>, vector<4x8xf32>, vector<2x16x8xf32> -> vector<2x16x8xf32>
    %16 = arith.addf %11, %15 : vector<2x16x8xf32>
    %17 = vector.extract_strided_slice %10 {offsets = [0, 1, 0], sizes = [2, 16, 4], strides = [1, 1, 1]} : vector<2x18x4xf32> to vector<2x16x4xf32>
    %c1 = arith.constant 1 : index
    %c0_12 = arith.constant 0 : index
    %c0_13 = arith.constant 0 : index
    %18 = vector.load %arg2[%c1, %c0_12, %c0_13] : memref<3x4x8xf32, #tpu.memory_space<vmem>>, vector<1x4x8xf32>
    %19 = vector.shape_cast %18 : vector<1x4x8xf32> to vector<4x8xf32>
    %cst_14 = arith.constant dense<0.000000e+00> : vector<2x16x8xf32>
    %20 = tpu.matmul %17, %19, %cst_14 {dimension_numbers = #tpu.dot_dimension_numbers<[2], [0], [0, 1], [1], [0, 0, 0, 1, 1, 1], [], []>} : vector<2x16x4xf32>, vector<4x8xf32>, vector<2x16x8xf32> -> vector<2x16x8xf32>
    %21 = arith.addf %16, %20 : vector<2x16x8xf32>
    %22 = vector.extract_strided_slice %10 {offsets = [0, 2, 0], sizes = [2, 16, 4], strides = [1, 1, 1]} : vector<2x18x4xf32> to vector<2x16x4xf32>
    %c2 = arith.constant 2 : index
    %c0_15 = arith.constant 0 : index
    %c0_16 = arith.constant 0 : index
    %23 = vector.load %arg2[%c2, %c0_15, %c0_16] : memref<3x4x8xf32, #tpu.memory_space<vmem>>, vector<1x4x8xf32>
    %24 = vector.shape_cast %23 : vector<1x4x8xf32> to vector<4x8xf32>
    %cst_17 = arith.constant dense<0.000000e+00> : vector<2x16x8xf32>
    %25 = tpu.matmul %22, %24, %cst_17 {dimension_numbers = #tpu.dot_dimension_numbers<[2], [0], [0, 1], [1], [0, 0, 0, 1, 1, 1], [], []>} : vector<2x16x4xf32>, vector<4x8xf32>, vector<2x16x8xf32> -> vector<2x16x8xf32>
    %26 = arith.addf %21, %25 : vector<2x16x8xf32>
    %c0_18 = arith.constant 0 : index
    %c0_19 = arith.constant 0 : index
    %27 = vector.load %arg3[%c0_18, %c0_19] : memref<1x8xf32, #tpu.memory_space<vmem>>, vector<1x8xf32>
    %28 = vector.shape_cast %27 : vector<1x8xf32> to vector<1x1x8xf32>
    %29 = vector.broadcast %28 : vector<1x1x8xf32> to vector<2x16x8xf32>
    %30 = arith.addf %26, %29 : vector<2x16x8xf32>
    %cst_20 = arith.constant 0.000000e+00 : f32
    %31 = vector.broadcast %cst_20 : f32 to vector<2x1x4xf32>
    %32 = tpu.concatenate %31, %8, %31 in 1 : vector<2x1x4xf32>, vector<2x16x4xf32>, vector<2x1x4xf32> -> vector<2x18x4xf32>
    %cst_21 = arith.constant 0.000000e+00 : f32
    %33 = vector.broadcast %cst_21 : f32 to vector<2x16x8xf32>
    %34 = vector.extract_strided_slice %32 {offsets = [0, 0, 0], sizes = [2, 16, 4], strides = [1, 1, 1]} : vector<2x18x4xf32> to vector<2x16x4xf32>
    %c0_22 = arith.constant 0 : index
    %c0_23 = arith.constant 0 : index
    %c0_24 = arith.constant 0 : index
    %35 = vector.load %arg4[%c0_22, %c0_23, %c0_24] : memref<3x4x8xf32, #tpu.memory_space<vmem>>, vector<1x4x8xf32>
    %36 = vector.shape_cast %35 : vector<1x4x8xf32> to vector<4x8xf32>
    %cst_25 = arith.constant dense<0.000000e+00> : vector<2x16x8xf32>
    %37 = tpu.matmul %34, %36, %cst_25 {dimension_numbers = #tpu.dot_dimension_numbers<[2], [0], [0, 1], [1], [0, 0, 0, 1, 1, 1], [], []>} : vector<2x16x4xf32>, vector<4x8xf32>, vector<2x16x8xf32> -> vector<2x16x8xf32>
    %38 = arith.addf %33, %37 : vector<2x16x8xf32>
    %39 = vector.extract_strided_slice %32 {offsets = [0, 1, 0], sizes = [2, 16, 4], strides = [1, 1, 1]} : vector<2x18x4xf32> to vector<2x16x4xf32>
    %c1_26 = arith.constant 1 : index
    %c0_27 = arith.constant 0 : index
    %c0_28 = arith.constant 0 : index
    %40 = vector.load %arg4[%c1_26, %c0_27, %c0_28] : memref<3x4x8xf32, #tpu.memory_space<vmem>>, vector<1x4x8xf32>
    %41 = vector.shape_cast %40 : vector<1x4x8xf32> to vector<4x8xf32>
    %cst_29 = arith.constant dense<0.000000e+00> : vector<2x16x8xf32>
    %42 = tpu.matmul %39, %41, %cst_29 {dimension_numbers = #tpu.dot_dimension_numbers<[2], [0], [0, 1], [1], [0, 0, 0, 1, 1, 1], [], []>} : vector<2x16x4xf32>, vector<4x8xf32>, vector<2x16x8xf32> -> vector<2x16x8xf32>
    %43 = arith.addf %38, %42 : vector<2x16x8xf32>
    %44 = vector.extract_strided_slice %32 {offsets = [0, 2, 0], sizes = [2, 16, 4], strides = [1, 1, 1]} : vector<2x18x4xf32> to vector<2x16x4xf32>
    %c2_30 = arith.constant 2 : index
    %c0_31 = arith.constant 0 : index
    %c0_32 = arith.constant 0 : index
    %45 = vector.load %arg4[%c2_30, %c0_31, %c0_32] : memref<3x4x8xf32, #tpu.memory_space<vmem>>, vector<1x4x8xf32>
    %46 = vector.shape_cast %45 : vector<1x4x8xf32> to vector<4x8xf32>
    %cst_33 = arith.constant dense<0.000000e+00> : vector<2x16x8xf32>
    %47 = tpu.matmul %44, %46, %cst_33 {dimension_numbers = #tpu.dot_dimension_numbers<[2], [0], [0, 1], [1], [0, 0, 0, 1, 1, 1], [], []>} : vector<2x16x4xf32>, vector<4x8xf32>, vector<2x16x8xf32> -> vector<2x16x8xf32>
    %48 = arith.addf %43, %47 : vector<2x16x8xf32>
    %c0_34 = arith.constant 0 : index
    %c0_35 = arith.constant 0 : index
    %49 = vector.load %arg5[%c0_34, %c0_35] : memref<1x8xf32, #tpu.memory_space<vmem>>, vector<1x8xf32>
    %50 = vector.shape_cast %49 : vector<1x8xf32> to vector<1x1x8xf32>
    %51 = vector.broadcast %50 : vector<1x1x8xf32> to vector<2x16x8xf32>
    %52 = arith.addf %48, %51 : vector<2x16x8xf32>
    %53 = vector.shape_cast %30 : vector<2x16x8xf32> to vector<2x16x1x8xf32>
    %54 = vector.shape_cast %52 : vector<2x16x8xf32> to vector<2x1x16x8xf32>
    %55 = vector.broadcast %53 : vector<2x16x1x8xf32> to vector<2x16x16x8xf32>
    %56 = vector.broadcast %54 : vector<2x1x16x8xf32> to vector<2x16x16x8xf32>
    %57 = arith.addf %55, %56 : vector<2x16x16x8xf32>
    %cst_36 = arith.constant 0.000000e+00 : f32
    %58 = vector.broadcast %cst_36 : f32 to vector<2x16x16x8xf32>
    %59 = arith.maximumf %57, %58 : vector<2x16x16x8xf32>
    %60 = vector.shape_cast %59 : vector<2x16x16x8xf32> to vector<2x256x8xf32>
    %c0_37 = arith.constant 0 : index
    %c0_38 = arith.constant 0 : index
    %61 = vector.load %arg6[%c0_37, %c0_38] : memref<8x8xf32, #tpu.memory_space<vmem>>, vector<8x8xf32>
    %cst_39 = arith.constant dense<0.000000e+00> : vector<2x256x8xf32>
    %62 = tpu.matmul %60, %61, %cst_39 {dimension_numbers = #tpu.dot_dimension_numbers<[2], [0], [0, 1], [1], [0, 0, 0, 1, 1, 1], [], []>} : vector<2x256x8xf32>, vector<8x8xf32>, vector<2x256x8xf32> -> vector<2x256x8xf32>
    %63 = tpu.transpose %62, [0, 2, 1] : vector<2x256x8xf32> -> vector<2x8x256xf32>
    %c0_40 = arith.constant 0 : index
    %c0_41 = arith.constant 0 : index
    %64 = vector.load %arg7[%c0_40, %c0_41] : memref<8x1xf32, #tpu.memory_space<vmem>>, vector<8x1xf32>
    %65 = vector.shape_cast %64 : vector<8x1xf32> to vector<1x8x1xf32>
    %66 = vector.broadcast %65 : vector<1x8x1xf32> to vector<2x8x256xf32>
    %67 = arith.addf %63, %66 : vector<2x8x256xf32>
    %cst_42 = arith.constant 0.000000e+00 : f32
    %68 = vector.broadcast %cst_42 : f32 to vector<2x8x256xf32>
    %69 = arith.subf %68, %67 : vector<2x8x256xf32>
    %70 = math.exp %69 : vector<2x8x256xf32>
    %cst_43 = arith.constant 1.000000e+00 : f32
    %71 = vector.broadcast %cst_43 : f32 to vector<2x8x256xf32>
    %72 = arith.addf %71, %70 : vector<2x8x256xf32>
    %cst_44 = arith.constant 1.000000e+00 : f32
    %73 = vector.broadcast %cst_44 : f32 to vector<2x8x256xf32>
    %74 = arith.divf %73, %72 : vector<2x8x256xf32>
    %c0_45 = arith.constant 0 : index
    %c0_46 = arith.constant 0 : index
    %c0_47 = arith.constant 0 : index
    %75 = vector.load %arg8[%c0_45, %c0_46, %c0_47] : memref<2x8x256xf32, #tpu.memory_space<vmem>>, vector<2x8x256xf32>
    tpu.vector_store %arg8[%c0_45, %c0_46, %c0_47], %74 {strides = array<i32>} : memref<2x8x256xf32, #tpu.memory_space<vmem>>, vector<2x8x256xf32>,
    return
  }
  func.func @transform_0(%arg0: i32) -> (i32, i32, i32, i32) {
    %c0_i32 = arith.constant 0 : i32
    %c0_i32_0 = arith.constant 0 : i32
    %c0_i32_1 = arith.constant 0 : i32
    %c0_i32_2 = arith.constant 0 : i32
    return %arg0, %c0_i32, %c0_i32_0, %c0_i32_1 : i32, i32, i32, i32
  }
  func.func @transform_1(%arg0: i32) -> (i32, i32, i32) {
    %c0_i32 = arith.constant 0 : i32
    %c0_i32_0 = arith.constant 0 : i32
    %c0_i32_1 = arith.constant 0 : i32
    %c0_i32_2 = arith.constant 0 : i32
    return %c0_i32, %c0_i32_0, %c0_i32_1 : i32, i32, i32
  }
  func.func @transform_2(%arg0: i32) -> (i32, i32) {
    %c0_i32 = arith.constant 0 : i32
    %c0_i32_0 = arith.constant 0 : i32
    %c0_i32_1 = arith.constant 0 : i32
    return %c0_i32, %c0_i32_0 : i32, i32
  }
  func.func @transform_3(%arg0: i32) -> (i32, i32, i32) {
    %c0_i32 = arith.constant 0 : i32
    %c0_i32_0 = arith.constant 0 : i32
    %c0_i32_1 = arith.constant 0 : i32
    %c0_i32_2 = arith.constant 0 : i32
    return %c0_i32, %c0_i32_0, %c0_i32_1 : i32, i32, i32
  }
  func.func @transform_4(%arg0: i32) -> (i32, i32) {
    %c0_i32 = arith.constant 0 : i32
    %c0_i32_0 = arith.constant 0 : i32
    %c0_i32_1 = arith.constant 0 : i32
    return %c0_i32, %c0_i32_0 : i32, i32
  }
  func.func @transform_5(%arg0: i32) -> (i32, i32) {
    %c0_i32 = arith.constant 0 : i32
    %c0_i32_0 = arith.constant 0 : i32
    %c0_i32_1 = arith.constant 0 : i32
    return %c0_i32, %c0_i32_0 : i32, i32
  }
  func.func @transform_6(%arg0: i32) -> (i32, i32) {
    %c0_i32 = arith.constant 0 : i32
    %c0_i32_0 = arith.constant 0 : i32
    %c0_i32_1 = arith.constant 0 : i32
    return %c0_i32, %c0_i32_0 : i32, i32
  }
  func.func @transform_7(%arg0: i32) -> (i32, i32, i32) {
    %c0_i32 = arith.constant 0 : i32
    %c0_i32_0 = arith.constant 0 : i32
    %c0_i32_1 = arith.constant 0 : i32
    return %arg0, %c0_i32, %c0_i32_0 : i32, i32, i32
  }
}

</mosaic_0001>

<llo_original>
// kernel: tpu_custom_call.1
$region0: #{tpu_custom_call.1}
  #allocation0 [shape = 'u32[]', space=smem, size = 0x4, offset = 0x4, fixed_abs, tag = 'smem constant byte address 0x4 - core index']
  #allocation1 [shape = 'u32[144,128]{1,0:T(1,128)}', space=vmem, size = 0x12000, scoped, tag = 'internal scratch']
  %s0 = inlined_call_operand.hbm [shape: f32[2,4,16,16], index: 0, kind: input, shape index: {}]
  %s1 = inlined_call_operand.vmem [shape: f32[3,4,8], index: 1, kind: input, shape index: {}]
  %s2 = inlined_call_operand.hbm [shape: f32[1,8], index: 2, kind: input, shape index: {}]
  %s3 = inlined_call_operand.hbm [shape: f32[3,4,8], index: 3, kind: input, shape index: {}]
  %s4 = inlined_call_operand.vmem [shape: f32[1,8], index: 4, kind: input, shape index: {}]
  %s5 = inlined_call_operand.vmem [shape: f32[8,8], index: 5, kind: input, shape index: {}]
  %s6 = inlined_call_operand.vmem [shape: f32[8,1], index: 6, kind: input, shape index: {}]
  %s7 = inlined_call_operand.hbm [shape: f32[2,8,256], index: 7, kind: output, shape index: {}]
  %s8 = sld [smem:[#allocation0]]
  $region50: #{tpu_custom_call.1} parent=0
    _
  %s10 = ssub.s32 1, %s8
  %s11 = scalar_select 0, %s10, %s8
  $region1: #{tpu_custom_call.1} parent=0
    #allocation2 [shape = 'u8[65536]{0}', space=vmem, size = 0x10000, scoped, tag = 'input window, operand 0, single buffered']
    #allocation3 [shape = 's32[1]{0}', space=sflag, size = 0x4, scoped, tag = 'scoped memory for tpu_custom_call.1']
    #allocation4 [shape = 's32[1]{0}', space=sflag, size = 0x4, scoped, tag = 'scoped memory for tpu_custom_call.1']
    #allocation5 [shape = 'u8[512]{0}', space=vmem, size = 0x400, scoped, tag = 'input window, operand 2, single buffered']
    #allocation6 [shape = 's32[1]{0}', space=sflag, size = 0x4, scoped, tag = 'scoped memory for tpu_custom_call.1']
    #allocation7 [shape = 'u8[6144]{0}', space=vmem, size = 0x1800, scoped, tag = 'input window, operand 3, single buffered']
    #allocation8 [shape = 'u8[16384]{0}', space=vmem, size = 0x4000, scoped, tag = 'output window, operand 0, single buffered']
    %12 = vsyncpa [#allocation3], 0
    %13 = vsyncpa [#allocation6], 0
    %14 = vsyncpa [#allocation4], 0
    // Predicated region
    $region2: #{tpu_custom_call.1} parent=1 // pred_check
      _
    $region3: #{tpu_custom_call.1} parent=1 // pred_check_branch
      %16 = sbr.rel (0) target = $region5
    $region4: #{tpu_custom_call.1} parent=1 // pred_region
      %s18 = ssub.s32 2048, 2048
      %19 = vsyncadd [#allocation3], %s18
      %s20 = sshll.u32 [#allocation2], 4
      %s21 = int_to_ptr.vmem [resolvable:$true] %s20
      %26 = dma.hbm_to_vmem [thread:$0]  %s0, 2048, %s21, [#allocation3], 128, 128, 8
    $region5: #{tpu_custom_call.1} parent=1 // pred_fallthru
      _
    // Predicated region
    $region6: #{tpu_custom_call.1} parent=1 // pred_check
      _
    $region7: #{tpu_custom_call.1} parent=1 // pred_check_branch
      %28 = sbr.rel (0) target = $region9
    $region8: #{tpu_custom_call.1} parent=1 // pred_region
      _
    $region9: #{tpu_custom_call.1} parent=1 // pred_fallthru
      _
    // Predicated region
    $region10: #{tpu_custom_call.1} parent=1 // pred_check
      _
    $region11: #{tpu_custom_call.1} parent=1 // pred_check_branch
      %30 = sbr.rel (0) target = $region13
    $region12: #{tpu_custom_call.1} parent=1 // pred_region
      %s32 = ssub.s32 16, 16
      %33 = vsyncadd [#allocation6], %s32
      %s35 = sshll.u32 [#allocation5], 4
      %s36 = int_to_ptr.vmem [resolvable:$true] %s35
      %38 = dma.hbm_to_vmem [thread:$0]  %s2, 16, %s36, [#allocation6]
    $region13: #{tpu_custom_call.1} parent=1 // pred_fallthru
      _
    // Predicated region
    $region14: #{tpu_custom_call.1} parent=1 // pred_check
      _
    $region15: #{tpu_custom_call.1} parent=1 // pred_check_branch
      %40 = sbr.rel (0) target = $region17
    $region16: #{tpu_custom_call.1} parent=1 // pred_region
      %s42 = ssub.s32 192, 192
      %43 = vsyncadd [#allocation6], %s42
      %s44 = sshll.u32 [#allocation7], 4
      %s45 = int_to_ptr.vmem [resolvable:$true] %s44
      %50 = dma.hbm_to_vmem [thread:$0]  %s3, 192, %s45, [#allocation6], 64, 64, 4
    $region17: #{tpu_custom_call.1} parent=1 // pred_fallthru
      _
    // Predicated region
    $region18: #{tpu_custom_call.1} parent=1 // pred_check
      _
    $region19: #{tpu_custom_call.1} parent=1 // pred_check_branch
      %52 = sbr.rel (0) target = $region21
    $region20: #{tpu_custom_call.1} parent=1 // pred_region
      _
    $region21: #{tpu_custom_call.1} parent=1 // pred_fallthru
      _
    // Predicated region
    $region22: #{tpu_custom_call.1} parent=1 // pred_check
      _
    $region23: #{tpu_custom_call.1} parent=1 // pred_check_branch
      %54 = sbr.rel (0) target = $region25
    $region24: #{tpu_custom_call.1} parent=1 // pred_region
      _
    $region25: #{tpu_custom_call.1} parent=1 // pred_fallthru
      _
    // Predicated region
    $region26: #{tpu_custom_call.1} parent=1 // pred_check
      _
    $region27: #{tpu_custom_call.1} parent=1 // pred_check_branch
      %56 = sbr.rel (0) target = $region29
    $region28: #{tpu_custom_call.1} parent=1 // pred_region
      _
    $region29: #{tpu_custom_call.1} parent=1 // pred_fallthru
      _
    // Predicated region
    $region30: #{tpu_custom_call.1} parent=1 // pred_check
      _
    $region31: #{tpu_custom_call.1} parent=1 // pred_check_branch
      %58 = sbr.rel (0) target = $region33
    $region32: #{tpu_custom_call.1} parent=1 // pred_region
      %59 = dma.done [#allocation3], 2048
    $region33: #{tpu_custom_call.1} parent=1 // pred_fallthru
      _
    // Predicated region
    $region34: #{tpu_custom_call.1} parent=1 // pred_check
      _
    $region35: #{tpu_custom_call.1} parent=1 // pred_check_branch
      %61 = sbr.rel (0) target = $region37
    $region36: #{tpu_custom_call.1} parent=1 // pred_region
      %62 = dma.done [#allocation6], 16
    $region37: #{tpu_custom_call.1} parent=1 // pred_fallthru
      _
    // Predicated region
    $region38: #{tpu_custom_call.1} parent=1 // pred_check
      _
    $region39: #{tpu_custom_call.1} parent=1 // pred_check_branch
      %64 = sbr.rel (0) target = $region41
    $region40: #{tpu_custom_call.1} parent=1 // pred_region
      %65 = dma.done [#allocation6], 192
    $region41: #{tpu_custom_call.1} parent=1 // pred_fallthru
      _
    %v66 = vld [vmem:[#allocation2] sm:$0xff]
    %v67 = vld [vmem:[#allocation2 + $0x8] sm:$0xff]
    %v68 = vld [vmem:[#allocation2 + $0x10] sm:$0xff]
    %v69 = vld [vmem:[#allocation2 + $0x18] sm:$0xff]
    %v70 = vld [vmem:[#allocation2 + $0x20] sm:$0xff]
    %v71 = vld [vmem:[#allocation2 + $0x28] sm:$0xff]
    %v72 = vld [vmem:[#allocation2 + $0x30] sm:$0xff]
    %v73 = vld [vmem:[#allocation2 + $0x38] sm:$0xff]
    %v74 = vld [vmem:[#allocation2 + $0x40] sm:$0xff]
    %v75 = vld [vmem:[#allocation2 + $0x48] sm:$0xff]
    %v76 = vld [vmem:[#allocation2 + $0x50] sm:$0xff]
    %v77 = vld [vmem:[#allocation2 + $0x58] sm:$0xff]
    %v78 = vld [vmem:[#allocation2 + $0x60] sm:$0xff]
    %v79 = vld [vmem:[#allocation2 + $0x68] sm:$0xff]
    %v80 = vld [vmem:[#allocation2 + $0x70] sm:$0xff]
    %v81 = vld [vmem:[#allocation2 + $0x78] sm:$0xff]
    %vm82 = vcmask 130048
    %v83 = vsel %vm82, %v66, 0.0
    %84 = vadd.xlane.f32.xlu0 %v83
    %v85 = vpop.xlane.xlu0 %84
    %v86 = vsel %vm82, %v67, 0.0
    %87 = vadd.xlane.f32.xlu0 %v86
    %v88 = vpop.xlane.xlu0 %87
    %v89 = vsel %vm82, %v68, 0.0
    %90 = vadd.xlane.f32.xlu0 %v89
    %v91 = vpop.xlane.xlu0 %90
    %v92 = vsel %vm82, %v69, 0.0
    %93 = vadd.xlane.f32.xlu0 %v92
    %v94 = vpop.xlane.xlu0 %93
    %v95 = vsel %vm82, %v70, 0.0
    %96 = vadd.xlane.f32.xlu0 %v95
    %v97 = vpop.xlane.xlu0 %96
    %v98 = vsel %vm82, %v71, 0.0
    %99 = vadd.xlane.f32.xlu0 %v98
    %v100 = vpop.xlane.xlu0 %99
    %v101 = vsel %vm82, %v72, 0.0
    %102 = vadd.xlane.f32.xlu0 %v101
    %v103 = vpop.xlane.xlu0 %102
    %v104 = vsel %vm82, %v73, 0.0
    %105 = vadd.xlane.f32.xlu0 %v104
    %v106 = vpop.xlane.xlu0 %105
    %v107 = vsel %vm82, %v74, 0.0
    %108 = vadd.xlane.f32.xlu0 %v107
    %v109 = vpop.xlane.xlu0 %108
    %v110 = vsel %vm82, %v75, 0.0
    %111 = vadd.xlane.f32.xlu0 %v110
    %v112 = vpop.xlane.xlu0 %111
    %v113 = vsel %vm82, %v76, 0.0
    %114 = vadd.xlane.f32.xlu0 %v113
    %v115 = vpop.xlane.xlu0 %114
    %v116 = vsel %vm82, %v77, 0.0
    %117 = vadd.xlane.f32.xlu0 %v116
    %v118 = vpop.xlane.xlu0 %117
    %v119 = vsel %vm82, %v78, 0.0
    %120 = vadd.xlane.f32.xlu0 %v119
    %v121 = vpop.xlane.xlu0 %120
    %v122 = vsel %vm82, %v79, 0.0
    %123 = vadd.xlane.f32.xlu0 %v122
    %v124 = vpop.xlane.xlu0 %123
    %v125 = vsel %vm82, %v80, 0.0
    %126 = vadd.xlane.f32.xlu0 %v125
    %v127 = vpop.xlane.xlu0 %126
    %v128 = vsel %vm82, %v81, 0.0
    %129 = vadd.xlane.f32.xlu0 %v128
    %v130 = vpop.xlane.xlu0 %129
    %v131 = vmul.f32 %v85, 0.0625
    %v132 = vmul.f32 %v88, 0.0625
    %v133 = vmul.f32 %v91, 0.0625
    %v134 = vmul.f32 %v94, 0.0625
    %v135 = vmul.f32 %v97, 0.0625
    %v136 = vmul.f32 %v100, 0.0625
    %v137 = vmul.f32 %v103, 0.0625
    %v138 = vmul.f32 %v106, 0.0625
    %v139 = vmul.f32 %v109, 0.0625
    %v140 = vmul.f32 %v112, 0.0625
    %v141 = vmul.f32 %v115, 0.0625
    %v142 = vmul.f32 %v118, 0.0625
    %v143 = vmul.f32 %v121, 0.0625
    %v144 = vmul.f32 %v124, 0.0625
    %v145 = vmul.f32 %v127, 0.0625
    %v146 = vmul.f32 %v130, 0.0625
    %v147 = vadd.f32 %v83, %v86
    %v148 = vrot.slane %v147, 4
    %v149 = vadd.f32 %v147, %v148
    %v150 = vrot.slane %v149, 2
    %v151 = vadd.f32 %v149, %v150
    %v152 = vrot.slane %v151, 1
    %v153 = vadd.f32 %v151, %v152
    %v154 = vadd.f32 %v89, %v92
    %v155 = vrot.slane %v154, 4
    %v156 = vadd.f32 %v154, %v155
    %v157 = vrot.slane %v156, 2
    %v158 = vadd.f32 %v156, %v157
    %v159 = vrot.slane %v158, 1
    %v160 = vadd.f32 %v158, %v159
    %v161 = vadd.f32 %v95, %v98
    %v162 = vrot.slane %v161, 4
    %v163 = vadd.f32 %v161, %v162
    %v164 = vrot.slane %v163, 2
    %v165 = vadd.f32 %v163, %v164
    %v166 = vrot.slane %v165, 1
    %v167 = vadd.f32 %v165, %v166
    %v168 = vadd.f32 %v101, %v104
    %v169 = vrot.slane %v168, 4
    %v170 = vadd.f32 %v168, %v169
    %v171 = vrot.slane %v170, 2
    %v172 = vadd.f32 %v170, %v171
    %v173 = vrot.slane %v172, 1
    %v174 = vadd.f32 %v172, %v173
    %v175 = vadd.f32 %v107, %v110
    %v176 = vrot.slane %v175, 4
    %v177 = vadd.f32 %v175, %v176
    %v178 = vrot.slane %v177, 2
    %v179 = vadd.f32 %v177, %v178
    %v180 = vrot.slane %v179, 1
    %v181 = vadd.f32 %v179, %v180
    %v182 = vadd.f32 %v113, %v116
    %v183 = vrot.slane %v182, 4
    %v184 = vadd.f32 %v182, %v183
    %v185 = vrot.slane %v184, 2
    %v186 = vadd.f32 %v184, %v185
    %v187 = vrot.slane %v186, 1
    %v188 = vadd.f32 %v186, %v187
    %v189 = vadd.f32 %v119, %v122
    %v190 = vrot.slane %v189, 4
    %v191 = vadd.f32 %v189, %v190
    %v192 = vrot.slane %v191, 2
    %v193 = vadd.f32 %v191, %v192
    %v194 = vrot.slane %v193, 1
    %v195 = vadd.f32 %v193, %v194
    %v196 = vadd.f32 %v125, %v128
    %v197 = vrot.slane %v196, 4
    %v198 = vadd.f32 %v196, %v197
    %v199 = vrot.slane %v198, 2
    %v200 = vadd.f32 %v198, %v199
    %v201 = vrot.slane %v200, 1
    %v202 = vadd.f32 %v200, %v201
    %v203 = vmul.f32 %v153, 0.0625
    %v204 = vmul.f32 %v160, 0.0625
    %v205 = vmul.f32 %v167, 0.0625
    %v206 = vmul.f32 %v174, 0.0625
    %v207 = vmul.f32 %v181, 0.0625
    %v208 = vmul.f32 %v188, 0.0625
    %v209 = vmul.f32 %v195, 0.0625
    %v210 = vmul.f32 %v202, 0.0625
    %v227 = vlaneseq
    %v228 = vand.u32 %v227, 127
    %v229 = vlaneseq
    %v230 = vshrl.u32 %v229, 7
    %v231 = vsub.s32 %v228, %v230
    %v232 = vrot.slane %v131, %v231
    %v233 = vadd.s32 %v228, 4294967288
    %v234 = vlaneseq
    %v235 = vshrl.u32 %v234, 7
    %v236 = vsub.s32 %v233, %v235
    %v237 = vrot.slane %v132, %v236
    %vm238 = vcmask 130112
    %v239 = vsel %vm238, %v237, %v232
    %v240 = vlaneseq
    %v241 = vshrl.u32 %v240, 7
    %v242 = vsub.s32 %v228, %v241
    %v243 = vrot.slane %v133, %v242
    %v244 = vlaneseq
    %v245 = vshrl.u32 %v244, 7
    %v246 = vsub.s32 %v233, %v245
    %v247 = vrot.slane %v134, %v246
    %v248 = vsel %vm238, %v247, %v243
    %v249 = vlaneseq
    %v250 = vshrl.u32 %v249, 7
    %v251 = vsub.s32 %v228, %v250
    %v252 = vrot.slane %v135, %v251
    %v253 = vlaneseq
    %v254 = vshrl.u32 %v253, 7
    %v255 = vsub.s32 %v233, %v254
    %v256 = vrot.slane %v136, %v255
    %v257 = vsel %vm238, %v256, %v252
    %v258 = vlaneseq
    %v259 = vshrl.u32 %v258, 7
    %v260 = vsub.s32 %v228, %v259
    %v261 = vrot.slane %v137, %v260
    %v262 = vlaneseq
    %v263 = vshrl.u32 %v262, 7
    %v264 = vsub.s32 %v233, %v263
    %v265 = vrot.slane %v138, %v264
    %v266 = vsel %vm238, %v265, %v261
    %v267 = vlaneseq
    %v268 = vshrl.u32 %v267, 7
    %v269 = vsub.s32 %v228, %v268
    %v270 = vrot.slane %v139, %v269
    %v271 = vlaneseq
    %v272 = vshrl.u32 %v271, 7
    %v273 = vsub.s32 %v233, %v272
    %v274 = vrot.slane %v140, %v273
    %v275 = vsel %vm238, %v274, %v270
    %v276 = vlaneseq
    %v277 = vshrl.u32 %v276, 7
    %v278 = vsub.s32 %v228, %v277
    %v279 = vrot.slane %v141, %v278
    %v280 = vlaneseq
    %v281 = vshrl.u32 %v280, 7
    %v282 = vsub.s32 %v233, %v281
    %v283 = vrot.slane %v142, %v282
    %v284 = vsel %vm238, %v283, %v279
    %v285 = vlaneseq
    %v286 = vshrl.u32 %v285, 7
    %v287 = vsub.s32 %v228, %v286
    %v288 = vrot.slane %v143, %v287
    %v289 = vlaneseq
    %v290 = vshrl.u32 %v289, 7
    %v291 = vsub.s32 %v233, %v290
    %v292 = vrot.slane %v144, %v291
    %v293 = vsel %vm238, %v292, %v288
    %v294 = vlaneseq
    %v295 = vshrl.u32 %v294, 7
    %v296 = vsub.s32 %v228, %v295
    %v297 = vrot.slane %v145, %v296
    %v298 = vlaneseq
    %v299 = vshrl.u32 %v298, 7
    %v300 = vsub.s32 %v233, %v299
    %v301 = vrot.slane %v146, %v300
    %v302 = vsel %vm238, %v301, %v297
    %vm303 = vcmask 1041409
    %v304 = vsel %vm303, %v248, %v239
    %vm305 = vcmask 1042434
    %v306 = vsel %vm305, %v257, %v304
    %vm307 = vcmask 1043459
    %v308 = vsel %vm307, %v266, %v306
    %v309 = vsel %vm303, %v284, %v275
    %v310 = vsel %vm305, %v293, %v309
    %v311 = vsel %vm307, %v302, %v310
    %314 = vxpose.xlu0.b32.start [1/16] %v308, 128
    %315 = vxpose.xlu0.b32.cont [2/16] 0.0, 128
    %316 = vxpose.xlu0.b32.cont [3/16] 0.0, 128
    %317 = vxpose.xlu0.b32.cont [4/16] 0.0, 128
    %318 = vxpose.xlu0.b32.cont [5/16] 0.0, 128
    %319 = vxpose.xlu0.b32.cont [6/16] 0.0, 128
    %320 = vxpose.xlu0.b32.cont [7/16] 0.0, 128
    %321 = vxpose.xlu0.b32.cont [8/16] 0.0, 128
    %322 = vxpose.xlu0.b32.cont [9/16] 0.0, 128
    %323 = vxpose.xlu0.b32.cont [10/16] 0.0, 128
    %324 = vxpose.xlu0.b32.cont [11/16] 0.0, 128
    %325 = vxpose.xlu0.b32.cont [12/16] 0.0, 128
    %326 = vxpose.xlu0.b32.cont [13/16] 0.0, 128
    %327 = vxpose.xlu0.b32.cont [14/16] 0.0, 128
    %328 = vxpose.xlu0.b32.cont [15/16] 0.0, 128
    %329 = vxpose.xlu0.b32.end [16/16] 0.0, 128
    %v330 = vpop.trf.xlu0
    %v331 = vpop.trf.xlu0
    %v332 = vpop.trf.xlu0
    %v333 = vpop.trf.xlu0
    %v334 = vpop.trf.xlu0
    %v335 = vpop.trf.xlu0
    %v336 = vpop.trf.xlu0
    %v337 = vpop.trf.xlu0
    %v338 = vpop.trf.xlu0
    %v339 = vpop.trf.xlu0
    %v340 = vpop.trf.xlu0
    %v341 = vpop.trf.xlu0
    %v342 = vpop.trf.xlu0
    %v343 = vpop.trf.xlu0
    %v344 = vpop.trf.xlu0
    %v345 = vpop.trf.xlu0
    %346 = vxpose.xlu0.b32.start [1/16] %v311, 128
    %347 = vxpose.xlu0.b32.cont [2/16] 0.0, 128
    %348 = vxpose.xlu0.b32.cont [3/16] 0.0, 128
    %349 = vxpose.xlu0.b32.cont [4/16] 0.0, 128
    %350 = vxpose.xlu0.b32.cont [5/16] 0.0, 128
    %351 = vxpose.xlu0.b32.cont [6/16] 0.0, 128
    %352 = vxpose.xlu0.b32.cont [7/16] 0.0, 128
    %353 = vxpose.xlu0.b32.cont [8/16] 0.0, 128
    %354 = vxpose.xlu0.b32.cont [9/16] 0.0, 128
    %355 = vxpose.xlu0.b32.cont [10/16] 0.0, 128
    %356 = vxpose.xlu0.b32.cont [11/16] 0.0, 128
    %357 = vxpose.xlu0.b32.cont [12/16] 0.0, 128
    %358 = vxpose.xlu0.b32.cont [13/16] 0.0, 128
    %359 = vxpose.xlu0.b32.cont [14/16] 0.0, 128
    %360 = vxpose.xlu0.b32.cont [15/16] 0.0, 128
    %361 = vxpose.xlu0.b32.end [16/16] 0.0, 128
    %v362 = vpop.trf.xlu0
    %v363 = vpop.trf.xlu0
    %v364 = vpop.trf.xlu0
    %v365 = vpop.trf.xlu0
    %v366 = vpop.trf.xlu0
    %v367 = vpop.trf.xlu0
    %v368 = vpop.trf.xlu0
    %v369 = vpop.trf.xlu0
    %v370 = vpop.trf.xlu0
    %v371 = vpop.trf.xlu0
    %v372 = vpop.trf.xlu0
    %v373 = vpop.trf.xlu0
    %v374 = vpop.trf.xlu0
    %v375 = vpop.trf.xlu0
    %v376 = vpop.trf.xlu0
    %v377 = vpop.trf.xlu0
    %v386 = vsel %vm303, %v204, %v203
    %v387 = vsel %vm305, %v205, %v386
    %v388 = vsel %vm307, %v206, %v387
    %v389 = vsel %vm303, %v208, %v207
    %v390 = vsel %vm305, %v209, %v389
    %v391 = vsel %vm307, %v210, %v390
    %394 = vxpose.xlu0.b32.start [1/16] %v388, 128
    %395 = vxpose.xlu0.b32.cont [2/16] 0.0, 128
    %396 = vxpose.xlu0.b32.cont [3/16] 0.0, 128
    %397 = vxpose.xlu0.b32.cont [4/16] 0.0, 128
    %398 = vxpose.xlu0.b32.cont [5/16] 0.0, 128
    %399 = vxpose.xlu0.b32.cont [6/16] 0.0, 128
    %400 = vxpose.xlu0.b32.cont [7/16] 0.0, 128
    %401 = vxpose.xlu0.b32.cont [8/16] 0.0, 128
    %402 = vxpose.xlu0.b32.cont [9/16] 0.0, 128
    %403 = vxpose.xlu0.b32.cont [10/16] 0.0, 128
    %404 = vxpose.xlu0.b32.cont [11/16] 0.0, 128
    %405 = vxpose.xlu0.b32.cont [12/16] 0.0, 128
    %406 = vxpose.xlu0.b32.cont [13/16] 0.0, 128
    %407 = vxpose.xlu0.b32.cont [14/16] 0.0, 128
    %408 = vxpose.xlu0.b32.cont [15/16] 0.0, 128
    %409 = vxpose.xlu0.b32.end [16/16] 0.0, 128
    %v410 = vpop.trf.xlu0
    %v411 = vpop.trf.xlu0
    %v412 = vpop.trf.xlu0
    %v413 = vpop.trf.xlu0
    %v414 = vpop.trf.xlu0
    %v415 = vpop.trf.xlu0
    %v416 = vpop.trf.xlu0
    %v417 = vpop.trf.xlu0
    %v418 = vpop.trf.xlu0
    %v419 = vpop.trf.xlu0
    %v420 = vpop.trf.xlu0
    %v421 = vpop.trf.xlu0
    %v422 = vpop.trf.xlu0
    %v423 = vpop.trf.xlu0
    %v424 = vpop.trf.xlu0
    %v425 = vpop.trf.xlu0
    %426 = vxpose.xlu0.b32.start [1/16] %v391, 128
    %427 = vxpose.xlu0.b32.cont [2/16] 0.0, 128
    %428 = vxpose.xlu0.b32.cont [3/16] 0.0, 128
    %429 = vxpose.xlu0.b32.cont [4/16] 0.0, 128
    %430 = vxpose.xlu0.b32.cont [5/16] 0.0, 128
    %431 = vxpose.xlu0.b32.cont [6/16] 0.0, 128
    %432 = vxpose.xlu0.b32.cont [7/16] 0.0, 128
    %433 = vxpose.xlu0.b32.cont [8/16] 0.0, 128
    %434 = vxpose.xlu0.b32.cont [9/16] 0.0, 128
    %435 = vxpose.xlu0.b32.cont [10/16] 0.0, 128
    %436 = vxpose.xlu0.b32.cont [11/16] 0.0, 128
    %437 = vxpose.xlu0.b32.cont [12/16] 0.0, 128
    %438 = vxpose.xlu0.b32.cont [13/16] 0.0, 128
    %439 = vxpose.xlu0.b32.cont [14/16] 0.0, 128
    %440 = vxpose.xlu0.b32.cont [15/16] 0.0, 128
    %441 = vxpose.xlu0.b32.end [16/16] 0.0, 128
    %v442 = vpop.trf.xlu0
    %v443 = vpop.trf.xlu0
    %v444 = vpop.trf.xlu0
    %v445 = vpop.trf.xlu0
    %v446 = vpop.trf.xlu0
    %v447 = vpop.trf.xlu0
    %v448 = vpop.trf.xlu0
    %v449 = vpop.trf.xlu0
    %v450 = vpop.trf.xlu0
    %v451 = vpop.trf.xlu0
    %v452 = vpop.trf.xlu0
    %v453 = vpop.trf.xlu0
    %v454 = vpop.trf.xlu0
    %v455 = vpop.trf.xlu0
    %v456 = vpop.trf.xlu0
    %v457 = vpop.trf.xlu0
    %vm462 = vcmask 1040384
    %v463 = vrot.slane %v330, 7
    %v464 = vrot.slane %v331, 7
    %v465 = vsel %vm462, %v463, %v464
    %v466 = vrot.slane %v362, 7
    %v467 = vrot.slane %v363, 7
    %v468 = vsel %vm462, %v466, %v467
    %v473 = vsel %vm462, 0.0, %v463
    %v474 = vsel %vm462, 0.0, %v466
    %v475 = vsel %vm462, %v464, 0.0
    %v476 = vsel %vm462, %v467, 0.0
    %v477 = vld [vmem:[%s1] sm:$0xf]
    %s478 = scalar_lea.vmem %s1, 4
    %v479 = vld [vmem:[%s478] sm:$0xf]
    %vm484 = vcmask 1046528
    %v485 = vrot.slane %v473, 1
    %v486 = vrot.slane %v465, 1
    %v487 = vsel %vm484, %v485, %v486
    %v488 = vrot.slane %v475, 1
    %v489 = vsel %vm484, %v486, %v488
    %v490 = vrot.slane %v474, 1
    %v491 = vrot.slane %v468, 1
    %v492 = vsel %vm484, %v490, %v491
    %v493 = vrot.slane %v476, 1
    %v494 = vsel %vm484, %v491, %v493
    %vm495 = vcmask 31744
    %v496 = vsel %vm495, %v487, 0
    %v498 = vsel %vm495, %v489, 0
    %v500 = vsel %vm495, %v492, 0
    %v502 = vsel %vm495, %v494, 0
    %vm504 = vcmask 1043456
    %v506 = vsel %vm504, %v479, 0
    %508 = vmatprep.subr.mxu0 0.0
    %509 = vmatpush1.msra.mxu0 %v506
    %510 = vmatprep.subr.mxu0 0.0
    %511 = vmatpush1.msra.mxu0 0.0
    %512 = vmatprep.subr.mxu0 0.0
    %513 = vmatpush1.msra.mxu0 0.0
    %514 = vmatprep.subr.mxu0 0.0
    %515 = vmatpush1.msra.mxu0 0.0
    %516 = vmatprep.subr.mxu0 0.0
    %517 = vmatpush1.msra.mxu0 0.0
    %518 = vmatprep.subr.mxu0 0.0
    %519 = vmatpush1.msra.mxu0 0.0
    %520 = vmatprep.subr.mxu0 0.0
    %521 = vmatpush1.msra.mxu0 0.0
    %522 = vmatprep.subr.mxu0 0.0
    %523 = vmatpush1.msra.mxu0 0.0
    %524 = vmatprep.subr.mxu0 0.0
    %525 = vmatpush1.msra.mxu0 0.0
    %526 = vmatprep.subr.mxu0 0.0
    %527 = vmatpush1.msra.mxu0 0.0
    %528 = vmatprep.subr.mxu0 0.0
    %529 = vmatpush1.msra.mxu0 0.0
    %530 = vmatprep.subr.mxu0 0.0
    %531 = vmatpush1.msra.mxu0 0.0
    %532 = vmatprep.subr.mxu0 0.0
    %533 = vmatpush1.msra.mxu0 0.0
    %534 = vmatprep.subr.mxu0 0.0
    %535 = vmatpush1.msra.mxu0 0.0
    %536 = vmatprep.subr.mxu0 0.0
    %537 = vmatpush1.msra.mxu0 0.0
    %538 = vmatprep.subr.mxu0 0.0
    %539 = vmatpush1.msra.mxu0 0.0
    %540 = vmatprep.subr.mxu0 0.0
    %541 = vmatpush1.msra.mxu0 0.0
    %542 = vmatprep.subr.mxu0 0.0
    %543 = vmatpush1.msra.mxu0 0.0
    %544 = vmatprep.subr.mxu0 0.0
    %545 = vmatpush1.msra.mxu0 0.0
    %546 = vmatprep.subr.mxu0 0.0
    %547 = vmatpush1.msra.mxu0 0.0
    %548 = vmatprep.subr.mxu0 0.0
    %549 = vmatpush1.msra.mxu0 0.0
    %550 = vmatprep.subr.mxu0 0.0
    %551 = vmatpush1.msra.mxu0 0.0
    %552 = vmatprep.subr.mxu0 0.0
    %553 = vmatpush1.msra.mxu0 0.0
    %554 = vmatprep.subr.mxu0 0.0
    %555 = vmatpush1.msra.mxu0 0.0
    %556 = vmatprep.subr.mxu0 0.0
    %557 = vmatpush1.msra.mxu0 0.0
    %558 = vmatprep.subr.mxu0 0.0
    %559 = vmatpush1.msra.mxu0 0.0
    %560 = vmatprep.subr.mxu0 0.0
    %561 = vmatpush1.msra.mxu0 0.0
    %562 = vmatprep.subr.mxu0 0.0
    %563 = vmatpush1.msra.mxu0 0.0
    %564 = vmatprep.subr.mxu0 0.0
    %565 = vmatpush1.msra.mxu0 0.0
    %566 = vmatprep.subr.mxu0 0.0
    %567 = vmatpush1.msra.mxu0 0.0
    %568 = vmatprep.subr.mxu0 0.0
    %569 = vmatpush1.msra.mxu0 0.0
    %570 = vmatprep.subr.mxu0 0.0
    %571 = vmatpush1.msra.mxu0 0.0
    %572 = vmatprep.mubr.f32.mxu0 0.0
    %573 = vmatmul.mubr.f32.gmra.mrb[0].mxu0 %v496
    %v574 = vpop.f32.mrb[0].mxu0
    %v575 = vadd.f32 0.0, %v574
    %v576 = vpop.f32.mrb[0].mxu0
    %577 = vmatprep.mubr.f32.mxu0 0.0
    %578 = vmatmul.mubr.f32.gmra.mrb[0].mxu0 %v498
    %v579 = vpop.f32.mrb[0].mxu0
    %v580 = vadd.f32 0.0, %v579
    %v581 = vpop.f32.mrb[0].mxu0
    %582 = vmatprep.mubr.f32.mxu0 0.0
    %583 = vmatmul.mubr.f32.gmra.mrb[0].mxu0 %v500
    %v584 = vpop.f32.mrb[0].mxu0
    %v585 = vadd.f32 0.0, %v584
    %v586 = vpop.f32.mrb[0].mxu0
    %587 = vmatprep.mubr.f32.mxu0 0.0
    %588 = vmatmul.mubr.f32.gmra.mrb[0].mxu0 %v502
    %v589 = vpop.f32.mrb[0].mxu0
    %v590 = vadd.f32 0.0, %v589
    %v591 = vpop.f32.mrb[0].mxu0
    %592 = vdwg.mxu0
    %v593 = vsel %vm495, %v473, 0
    %v595 = vsel %vm495, %v465, 0
    %v597 = vsel %vm495, %v474, 0
    %v599 = vsel %vm495, %v468, 0
    %v602 = vsel %vm504, %v477, 0
    %604 = vmatprep.subr.mxu0 0.0
    %605 = vmatpush1.msra.mxu0 %v602
    %606 = vmatprep.subr.mxu0 0.0
    %607 = vmatpush1.msra.mxu0 0.0
    %608 = vmatprep.subr.mxu0 0.0
    %609 = vmatpush1.msra.mxu0 0.0
    %610 = vmatprep.subr.mxu0 0.0
    %611 = vmatpush1.msra.mxu0 0.0
    %612 = vmatprep.subr.mxu0 0.0
    %613 = vmatpush1.msra.mxu0 0.0
    %614 = vmatprep.subr.mxu0 0.0
    %615 = vmatpush1.msra.mxu0 0.0
    %616 = vmatprep.subr.mxu0 0.0
    %617 = vmatpush1.msra.mxu0 0.0
    %618 = vmatprep.subr.mxu0 0.0
    %619 = vmatpush1.msra.mxu0 0.0
    %620 = vmatprep.subr.mxu0 0.0
    %621 = vmatpush1.msra.mxu0 0.0
    %622 = vmatprep.subr.mxu0 0.0
    %623 = vmatpush1.msra.mxu0 0.0
    %624 = vmatprep.subr.mxu0 0.0
    %625 = vmatpush1.msra.mxu0 0.0
    %626 = vmatprep.subr.mxu0 0.0
    %627 = vmatpush1.msra.mxu0 0.0
    %628 = vmatprep.subr.mxu0 0.0
    %629 = vmatpush1.msra.mxu0 0.0
    %630 = vmatprep.subr.mxu0 0.0
    %631 = vmatpush1.msra.mxu0 0.0
    %632 = vmatprep.subr.mxu0 0.0
    %633 = vmatpush1.msra.mxu0 0.0
    %634 = vmatprep.subr.mxu0 0.0
    %635 = vmatpush1.msra.mxu0 0.0
    %636 = vmatprep.subr.mxu0 0.0
    %637 = vmatpush1.msra.mxu0 0.0
    %638 = vmatprep.subr.mxu0 0.0
    %639 = vmatpush1.msra.mxu0 0.0
    %640 = vmatprep.subr.mxu0 0.0
    %641 = vmatpush1.msra.mxu0 0.0
    %642 = vmatprep.subr.mxu0 0.0
    %643 = vmatpush1.msra.mxu0 0.0
    %644 = vmatprep.subr.mxu0 0.0
    %645 = vmatpush1.msra.mxu0 0.0
    %646 = vmatprep.subr.mxu0 0.0
    %647 = vmatpush1.msra.mxu0 0.0
    %648 = vmatprep.subr.mxu0 0.0
    %649 = vmatpush1.msra.mxu0 0.0
    %650 = vmatprep.subr.mxu0 0.0
    %651 = vmatpush1.msra.mxu0 0.0
    %652 = vmatprep.subr.mxu0 0.0
    %653 = vmatpush1.msra.mxu0 0.0
    %654 = vmatprep.subr.mxu0 0.0
    %655 = vmatpush1.msra.mxu0 0.0
    %656 = vmatprep.subr.mxu0 0.0
    %657 = vmatpush1.msra.mxu0 0.0
    %658 = vmatprep.subr.mxu0 0.0
    %659 = vmatpush1.msra.mxu0 0.0
    %660 = vmatprep.subr.mxu0 0.0
    %661 = vmatpush1.msra.mxu0 0.0
    %662 = vmatprep.subr.mxu0 0.0
    %663 = vmatpush1.msra.mxu0 0.0
    %664 = vmatprep.subr.mxu0 0.0
    %665 = vmatpush1.msra.mxu0 0.0
    %666 = vmatprep.subr.mxu0 0.0
    %667 = vmatpush1.msra.mxu0 0.0
    %668 = vmatprep.mubr.f32.mxu0 0.0
    %669 = vmatmul.mubr.f32.gmra.mrb[0].mxu0 %v593
    %v670 = vpop.f32.mrb[0].mxu0
    %v671 = vadd.f32 %v575, %v670
    %v672 = vpop.f32.mrb[0].mxu0
    %673 = vmatprep.mubr.f32.mxu0 0.0
    %674 = vmatmul.mubr.f32.gmra.mrb[0].mxu0 %v595
    %v675 = vpop.f32.mrb[0].mxu0
    %v676 = vadd.f32 %v580, %v675
    %v677 = vpop.f32.mrb[0].mxu0
    %678 = vmatprep.mubr.f32.mxu0 0.0
    %679 = vmatmul.mubr.f32.gmra.mrb[0].mxu0 %v597
    %v680 = vpop.f32.mrb[0].mxu0
    %v681 = vadd.f32 %v585, %v680
    %v682 = vpop.f32.mrb[0].mxu0
    %683 = vmatprep.mubr.f32.mxu0 0.0
    %684 = vmatmul.mubr.f32.gmra.mrb[0].mxu0 %v599
    %v685 = vpop.f32.mrb[0].mxu0
    %v686 = vadd.f32 %v590, %v685
    %v687 = vpop.f32.mrb[0].mxu0
    %688 = vdwg.mxu0
    %s689 = scalar_lea.vmem %s1, 8
    %v690 = vld [vmem:[%s689] sm:$0xf]
    %vm691 = vcmask 1045504
    %v692 = vrot.slane %v473, 2
    %v693 = vrot.slane %v465, 2
    %v694 = vsel %vm691, %v692, %v693
    %v695 = vrot.slane %v475, 2
    %v696 = vsel %vm691, %v693, %v695
    %v697 = vrot.slane %v474, 2
    %v698 = vrot.slane %v468, 2
    %v699 = vsel %vm691, %v697, %v698
    %v700 = vrot.slane %v476, 2
    %v701 = vsel %vm691, %v698, %v700
    %v702 = vsel %vm495, %v694, 0
    %v704 = vsel %vm495, %v696, 0
    %v706 = vsel %vm495, %v699, 0
    %v708 = vsel %vm495, %v701, 0
    %v711 = vsel %vm504, %v690, 0
    %713 = vmatprep.subr.mxu0 0.0
    %714 = vmatpush1.msra.mxu0 %v711
    %715 = vmatprep.subr.mxu0 0.0
    %716 = vmatpush1.msra.mxu0 0.0
    %717 = vmatprep.subr.mxu0 0.0
    %718 = vmatpush1.msra.mxu0 0.0
    %719 = vmatprep.subr.mxu0 0.0
    %720 = vmatpush1.msra.mxu0 0.0
    %721 = vmatprep.subr.mxu0 0.0
    %722 = vmatpush1.msra.mxu0 0.0
    %723 = vmatprep.subr.mxu0 0.0
    %724 = vmatpush1.msra.mxu0 0.0
    %725 = vmatprep.subr.mxu0 0.0
    %726 = vmatpush1.msra.mxu0 0.0
    %727 = vmatprep.subr.mxu0 0.0
    %728 = vmatpush1.msra.mxu0 0.0
    %729 = vmatprep.subr.mxu0 0.0
    %730 = vmatpush1.msra.mxu0 0.0
    %731 = vmatprep.subr.mxu0 0.0
    %732 = vmatpush1.msra.mxu0 0.0
    %733 = vmatprep.subr.mxu0 0.0
    %734 = vmatpush1.msra.mxu0 0.0
    %735 = vmatprep.subr.mxu0 0.0
    %736 = vmatpush1.msra.mxu0 0.0
    %737 = vmatprep.subr.mxu0 0.0
    %738 = vmatpush1.msra.mxu0 0.0
    %739 = vmatprep.subr.mxu0 0.0
    %740 = vmatpush1.msra.mxu0 0.0
    %741 = vmatprep.subr.mxu0 0.0
    %742 = vmatpush1.msra.mxu0 0.0
    %743 = vmatprep.subr.mxu0 0.0
    %744 = vmatpush1.msra.mxu0 0.0
    %745 = vmatprep.subr.mxu0 0.0
    %746 = vmatpush1.msra.mxu0 0.0
    %747 = vmatprep.subr.mxu0 0.0
    %748 = vmatpush1.msra.mxu0 0.0
    %749 = vmatprep.subr.mxu0 0.0
    %750 = vmatpush1.msra.mxu0 0.0
    %751 = vmatprep.subr.mxu0 0.0
    %752 = vmatpush1.msra.mxu0 0.0
    %753 = vmatprep.subr.mxu0 0.0
    %754 = vmatpush1.msra.mxu0 0.0
    %755 = vmatprep.subr.mxu0 0.0
    %756 = vmatpush1.msra.mxu0 0.0
    %757 = vmatprep.subr.mxu0 0.0
    %758 = vmatpush1.msra.mxu0 0.0
    %759 = vmatprep.subr.mxu0 0.0
    %760 = vmatpush1.msra.mxu0 0.0
    %761 = vmatprep.subr.mxu0 0.0
    %762 = vmatpush1.msra.mxu0 0.0
    %763 = vmatprep.subr.mxu0 0.0
    %764 = vmatpush1.msra.mxu0 0.0
    %765 = vmatprep.subr.mxu0 0.0
    %766 = vmatpush1.msra.mxu0 0.0
    %767 = vmatprep.subr.mxu0 0.0
    %768 = vmatpush1.msra.mxu0 0.0
    %769 = vmatprep.subr.mxu0 0.0
    %770 = vmatpush1.msra.mxu0 0.0
    %771 = vmatprep.subr.mxu0 0.0
    %772 = vmatpush1.msra.mxu0 0.0
    %773 = vmatprep.subr.mxu0 0.0
    %774 = vmatpush1.msra.mxu0 0.0
    %775 = vmatprep.subr.mxu0 0.0
    %776 = vmatpush1.msra.mxu0 0.0
    %777 = vmatprep.mubr.f32.mxu0 0.0
    %778 = vmatmul.mubr.f32.gmra.mrb[0].mxu0 %v702
    %v779 = vpop.f32.mrb[0].mxu0
    %v780 = vadd.f32 0.0, %v779
    %v781 = vpop.f32.mrb[0].mxu0
    %782 = vmatprep.mubr.f32.mxu0 0.0
    %783 = vmatmul.mubr.f32.gmra.mrb[0].mxu0 %v704
    %v784 = vpop.f32.mrb[0].mxu0
    %v785 = vadd.f32 0.0, %v784
    %v786 = vpop.f32.mrb[0].mxu0
    %787 = vmatprep.mubr.f32.mxu0 0.0
    %788 = vmatmul.mubr.f32.gmra.mrb[0].mxu0 %v706
    %v789 = vpop.f32.mrb[0].mxu0
    %v790 = vadd.f32 0.0, %v789
    %v791 = vpop.f32.mrb[0].mxu0
    %792 = vmatprep.mubr.f32.mxu0 0.0
    %793 = vmatmul.mubr.f32.gmra.mrb[0].mxu0 %v708
    %v794 = vpop.f32.mrb[0].mxu0
    %v795 = vadd.f32 0.0, %v794
    %v796 = vpop.f32.mrb[0].mxu0
    %797 = vdwg.mxu0
    %v798 = vadd.f32 %v671, %v780
    %v799 = vadd.f32 %v676, %v785
    %v800 = vadd.f32 %v681, %v790
    %v801 = vadd.f32 %v686, %v795
    %v802 = vld [vmem:[#allocation5] sm:$0x1]
    %v804 = vlaneseq
    %v805 = vshrl.u32 %v804, 7
    %v806 = vsub.s32 0, %v805
    %v807 = vrot.slane %v802, %v806
    %v809 = vadd.f32 %v798, %v807
    %v810 = vadd.f32 %v799, %v807
    %v811 = vadd.f32 %v800, %v807
    %v812 = vadd.f32 %v801, %v807
    %v817 = vrot.slane %v410, 7
    %v818 = vrot.slane %v411, 7
    %v819 = vsel %vm462, %v817, %v818
    %v820 = vrot.slane %v442, 7
    %v821 = vrot.slane %v443, 7
    %v822 = vsel %vm462, %v820, %v821
    %v827 = vsel %vm462, 0.0, %v817
    %v828 = vsel %vm462, 0.0, %v820
    %v829 = vsel %vm462, %v818, 0.0
    %v830 = vsel %vm462, %v821, 0.0
    %v831 = vld [vmem:[#allocation7] sm:$0xf]
    %s832 = scalar_lea.vmem [#allocation7], 4
    %v833 = vld [vmem:[%s832] sm:$0xf]
    %v838 = vrot.slane %v827, 1
    %v839 = vrot.slane %v819, 1
    %v840 = vsel %vm484, %v838, %v839
    %v841 = vrot.slane %v829, 1
    %v842 = vsel %vm484, %v839, %v841
    %v843 = vrot.slane %v828, 1
    %v844 = vrot.slane %v822, 1
    %v845 = vsel %vm484, %v843, %v844
    %v846 = vrot.slane %v830, 1
    %v847 = vsel %vm484, %v844, %v846
    %v848 = vsel %vm495, %v840, 0
    %v850 = vsel %vm495, %v842, 0
    %v852 = vsel %vm495, %v845, 0
    %v854 = vsel %vm495, %v847, 0
    %v857 = vsel %vm504, %v833, 0
    %859 = vmatprep.subr.mxu0 0.0
    %860 = vmatpush1.msra.mxu0 %v857
    %861 = vmatprep.subr.mxu0 0.0
    %862 = vmatpush1.msra.mxu0 0.0
    %863 = vmatprep.subr.mxu0 0.0
    %864 = vmatpush1.msra.mxu0 0.0
    %865 = vmatprep.subr.mxu0 0.0
    %866 = vmatpush1.msra.mxu0 0.0
    %867 = vmatprep.subr.mxu0 0.0
    %868 = vmatpush1.msra.mxu0 0.0
    %869 = vmatprep.subr.mxu0 0.0
    %870 = vmatpush1.msra.mxu0 0.0
    %871 = vmatprep.subr.mxu0 0.0
    %872 = vmatpush1.msra.mxu0 0.0
    %873 = vmatprep.subr.mxu0 0.0
    %874 = vmatpush1.msra.mxu0 0.0
    %875 = vmatprep.subr.mxu0 0.0
    %876 = vmatpush1.msra.mxu0 0.0
    %877 = vmatprep.subr.mxu0 0.0
    %878 = vmatpush1.msra.mxu0 0.0
    %879 = vmatprep.subr.mxu0 0.0
    %880 = vmatpush1.msra.mxu0 0.0
    %881 = vmatprep.subr.mxu0 0.0
    %882 = vmatpush1.msra.mxu0 0.0
    %883 = vmatprep.subr.mxu0 0.0
    %884 = vmatpush1.msra.mxu0 0.0
    %885 = vmatprep.subr.mxu0 0.0
    %886 = vmatpush1.msra.mxu0 0.0
    %887 = vmatprep.subr.mxu0 0.0
    %888 = vmatpush1.msra.mxu0 0.0
    %889 = vmatprep.subr.mxu0 0.0
    %890 = vmatpush1.msra.mxu0 0.0
    %891 = vmatprep.subr.mxu0 0.0
    %892 = vmatpush1.msra.mxu0 0.0
    %893 = vmatprep.subr.mxu0 0.0
    %894 = vmatpush1.msra.mxu0 0.0
    %895 = vmatprep.subr.mxu0 0.0
    %896 = vmatpush1.msra.mxu0 0.0
    %897 = vmatprep.subr.mxu0 0.0
    %898 = vmatpush1.msra.mxu0 0.0
    %899 = vmatprep.subr.mxu0 0.0
    %900 = vmatpush1.msra.mxu0 0.0
    %901 = vmatprep.subr.mxu0 0.0
    %902 = vmatpush1.msra.mxu0 0.0
    %903 = vmatprep.subr.mxu0 0.0
    %904 = vmatpush1.msra.mxu0 0.0
    %905 = vmatprep.subr.mxu0 0.0
    %906 = vmatpush1.msra.mxu0 0.0
    %907 = vmatprep.subr.mxu0 0.0
    %908 = vmatpush1.msra.mxu0 0.0
    %909 = vmatprep.subr.mxu0 0.0
    %910 = vmatpush1.msra.mxu0 0.0
    %911 = vmatprep.subr.mxu0 0.0
    %912 = vmatpush1.msra.mxu0 0.0
    %913 = vmatprep.subr.mxu0 0.0
    %914 = vmatpush1.msra.mxu0 0.0
    %915 = vmatprep.subr.mxu0 0.0
    %916 = vmatpush1.msra.mxu0 0.0
    %917 = vmatprep.subr.mxu0 0.0
    %918 = vmatpush1.msra.mxu0 0.0
    %919 = vmatprep.subr.mxu0 0.0
    %920 = vmatpush1.msra.mxu0 0.0
    %921 = vmatprep.subr.mxu0 0.0
    %922 = vmatpush1.msra.mxu0 0.0
    %923 = vmatprep.mubr.f32.mxu0 0.0
    %924 = vmatmul.mubr.f32.gmra.mrb[0].mxu0 %v848
    %v925 = vpop.f32.mrb[0].mxu0
    %v926 = vadd.f32 0.0, %v925
    %v927 = vpop.f32.mrb[0].mxu0
    %928 = vmatprep.mubr.f32.mxu0 0.0
    %929 = vmatmul.mubr.f32.gmra.mrb[0].mxu0 %v850
    %v930 = vpop.f32.mrb[0].mxu0
    %v931 = vadd.f32 0.0, %v930
    %v932 = vpop.f32.mrb[0].mxu0
    %933 = vmatprep.mubr.f32.mxu0 0.0
    %934 = vmatmul.mubr.f32.gmra.mrb[0].mxu0 %v852
    %v935 = vpop.f32.mrb[0].mxu0
    %v936 = vadd.f32 0.0, %v935
    %v937 = vpop.f32.mrb[0].mxu0
    %938 = vmatprep.mubr.f32.mxu0 0.0
    %939 = vmatmul.mubr.f32.gmra.mrb[0].mxu0 %v854
    %v940 = vpop.f32.mrb[0].mxu0
    %v941 = vadd.f32 0.0, %v940
    %v942 = vpop.f32.mrb[0].mxu0
    %943 = vdwg.mxu0
    %v944 = vsel %vm495, %v827, 0
    %v946 = vsel %vm495, %v819, 0
    %v948 = vsel %vm495, %v828, 0
    %v950 = vsel %vm495, %v822, 0
    %v953 = vsel %vm504, %v831, 0
    %955 = vmatprep.subr.mxu0 0.0
    %956 = vmatpush1.msra.mxu0 %v953
    %957 = vmatprep.subr.mxu0 0.0
    %958 = vmatpush1.msra.mxu0 0.0
    %959 = vmatprep.subr.mxu0 0.0
    %960 = vmatpush1.msra.mxu0 0.0
    %961 = vmatprep.subr.mxu0 0.0
    %962 = vmatpush1.msra.mxu0 0.0
    %963 = vmatprep.subr.mxu0 0.0
    %964 = vmatpush1.msra.mxu0 0.0
    %965 = vmatprep.subr.mxu0 0.0
    %966 = vmatpush1.msra.mxu0 0.0
    %967 = vmatprep.subr.mxu0 0.0
    %968 = vmatpush1.msra.mxu0 0.0
    %969 = vmatprep.subr.mxu0 0.0
    %970 = vmatpush1.msra.mxu0 0.0
    %971 = vmatprep.subr.mxu0 0.0
    %972 = vmatpush1.msra.mxu0 0.0
    %973 = vmatprep.subr.mxu0 0.0
    %974 = vmatpush1.msra.mxu0 0.0
    %975 = vmatprep.subr.mxu0 0.0
    %976 = vmatpush1.msra.mxu0 0.0
    %977 = vmatprep.subr.mxu0 0.0
    %978 = vmatpush1.msra.mxu0 0.0
    %979 = vmatprep.subr.mxu0 0.0
    %980 = vmatpush1.msra.mxu0 0.0
    %981 = vmatprep.subr.mxu0 0.0
    %982 = vmatpush1.msra.mxu0 0.0
    %983 = vmatprep.subr.mxu0 0.0
    %984 = vmatpush1.msra.mxu0 0.0
    %985 = vmatprep.subr.mxu0 0.0
    %986 = vmatpush1.msra.mxu0 0.0
    %987 = vmatprep.subr.mxu0 0.0
    %988 = vmatpush1.msra.mxu0 0.0
    %989 = vmatprep.subr.mxu0 0.0
    %990 = vmatpush1.msra.mxu0 0.0
    %991 = vmatprep.subr.mxu0 0.0
    %992 = vmatpush1.msra.mxu0 0.0
    %993 = vmatprep.subr.mxu0 0.0
    %994 = vmatpush1.msra.mxu0 0.0
    %995 = vmatprep.subr.mxu0 0.0
    %996 = vmatpush1.msra.mxu0 0.0
    %997 = vmatprep.subr.mxu0 0.0
    %998 = vmatpush1.msra.mxu0 0.0
    %999 = vmatprep.subr.mxu0 0.0
    %1000 = vmatpush1.msra.mxu0 0.0
    %1001 = vmatprep.subr.mxu0 0.0
    %1002 = vmatpush1.msra.mxu0 0.0
    %1003 = vmatprep.subr.mxu0 0.0
    %1004 = vmatpush1.msra.mxu0 0.0
    %1005 = vmatprep.subr.mxu0 0.0
    %1006 = vmatpush1.msra.mxu0 0.0
    %1007 = vmatprep.subr.mxu0 0.0
    %1008 = vmatpush1.msra.mxu0 0.0
    %1009 = vmatprep.subr.mxu0 0.0
    %1010 = vmatpush1.msra.mxu0 0.0
    %1011 = vmatprep.subr.mxu0 0.0
    %1012 = vmatpush1.msra.mxu0 0.0
    %1013 = vmatprep.subr.mxu0 0.0
    %1014 = vmatpush1.msra.mxu0 0.0
    %1015 = vmatprep.subr.mxu0 0.0
    %1016 = vmatpush1.msra.mxu0 0.0
    %1017 = vmatprep.subr.mxu0 0.0
    %1018 = vmatpush1.msra.mxu0 0.0
    %1019 = vmatprep.mubr.f32.mxu0 0.0
    %1020 = vmatmul.mubr.f32.gmra.mrb[0].mxu0 %v944
    %v1021 = vpop.f32.mrb[0].mxu0
    %v1022 = vadd.f32 %v926, %v1021
    %v1023 = vpop.f32.mrb[0].mxu0
    %1024 = vmatprep.mubr.f32.mxu0 0.0
    %1025 = vmatmul.mubr.f32.gmra.mrb[0].mxu0 %v946
    %v1026 = vpop.f32.mrb[0].mxu0
    %v1027 = vadd.f32 %v931, %v1026
    %v1028 = vpop.f32.mrb[0].mxu0
    %1029 = vmatprep.mubr.f32.mxu0 0.0
    %1030 = vmatmul.mubr.f32.gmra.mrb[0].mxu0 %v948
    %v1031 = vpop.f32.mrb[0].mxu0
    %v1032 = vadd.f32 %v936, %v1031
    %v1033 = vpop.f32.mrb[0].mxu0
    %1034 = vmatprep.mubr.f32.mxu0 0.0
    %1035 = vmatmul.mubr.f32.gmra.mrb[0].mxu0 %v950
    %v1036 = vpop.f32.mrb[0].mxu0
    %v1037 = vadd.f32 %v941, %v1036
    %v1038 = vpop.f32.mrb[0].mxu0
    %1039 = vdwg.mxu0
    %s1040 = scalar_lea.vmem [#allocation7], 8
    %v1041 = vld [vmem:[%s1040] sm:$0xf]
    %v1042 = vrot.slane %v827, 2
    %v1043 = vrot.slane %v819, 2
    %v1044 = vsel %vm691, %v1042, %v1043
    %v1045 = vrot.slane %v829, 2
    %v1046 = vsel %vm691, %v1043, %v1045
    %v1047 = vrot.slane %v828, 2
    %v1048 = vrot.slane %v822, 2
    %v1049 = vsel %vm691, %v1047, %v1048
    %v1050 = vrot.slane %v830, 2
    %v1051 = vsel %vm691, %v1048, %v1050
    %v1052 = vsel %vm495, %v1044, 0
    %v1054 = vsel %vm495, %v1046, 0
    %v1056 = vsel %vm495, %v1049, 0
    %v1058 = vsel %vm495, %v1051, 0
    %v1061 = vsel %vm504, %v1041, 0
    %1063 = vmatprep.subr.mxu0 0.0
    %1064 = vmatpush1.msra.mxu0 %v1061
    %1065 = vmatprep.subr.mxu0 0.0
    %1066 = vmatpush1.msra.mxu0 0.0
    %1067 = vmatprep.subr.mxu0 0.0
    %1068 = vmatpush1.msra.mxu0 0.0
    %1069 = vmatprep.subr.mxu0 0.0
    %1070 = vmatpush1.msra.mxu0 0.0
    %1071 = vmatprep.subr.mxu0 0.0
    %1072 = vmatpush1.msra.mxu0 0.0
    %1073 = vmatprep.subr.mxu0 0.0
    %1074 = vmatpush1.msra.mxu0 0.0
    %1075 = vmatprep.subr.mxu0 0.0
    %1076 = vmatpush1.msra.mxu0 0.0
    %1077 = vmatprep.subr.mxu0 0.0
    %1078 = vmatpush1.msra.mxu0 0.0
    %1079 = vmatprep.subr.mxu0 0.0
    %1080 = vmatpush1.msra.mxu0 0.0
    %1081 = vmatprep.subr.mxu0 0.0
    %1082 = vmatpush1.msra.mxu0 0.0
    %1083 = vmatprep.subr.mxu0 0.0
    %1084 = vmatpush1.msra.mxu0 0.0
    %1085 = vmatprep.subr.mxu0 0.0
    %1086 = vmatpush1.msra.mxu0 0.0
    %1087 = vmatprep.subr.mxu0 0.0
    %1088 = vmatpush1.msra.mxu0 0.0
    %1089 = vmatprep.subr.mxu0 0.0
    %1090 = vmatpush1.msra.mxu0 0.0
    %1091 = vmatprep.subr.mxu0 0.0
    %1092 = vmatpush1.msra.mxu0 0.0
    %1093 = vmatprep.subr.mxu0 0.0
    %1094 = vmatpush1.msra.mxu0 0.0
    %1095 = vmatprep.subr.mxu0 0.0
    %1096 = vmatpush1.msra.mxu0 0.0
    %1097 = vmatprep.subr.mxu0 0.0
    %1098 = vmatpush1.msra.mxu0 0.0
    %1099 = vmatprep.subr.mxu0 0.0
    %1100 = vmatpush1.msra.mxu0 0.0
    %1101 = vmatprep.subr.mxu0 0.0
    %1102 = vmatpush1.msra.mxu0 0.0
    %1103 = vmatprep.subr.mxu0 0.0
    %1104 = vmatpush1.msra.mxu0 0.0
    %1105 = vmatprep.subr.mxu0 0.0
    %1106 = vmatpush1.msra.mxu0 0.0
    %1107 = vmatprep.subr.mxu0 0.0
    %1108 = vmatpush1.msra.mxu0 0.0
    %1109 = vmatprep.subr.mxu0 0.0
    %1110 = vmatpush1.msra.mxu0 0.0
    %1111 = vmatprep.subr.mxu0 0.0
    %1112 = vmatpush1.msra.mxu0 0.0
    %1113 = vmatprep.subr.mxu0 0.0
    %1114 = vmatpush1.msra.mxu0 0.0
    %1115 = vmatprep.subr.mxu0 0.0
    %1116 = vmatpush1.msra.mxu0 0.0
    %1117 = vmatprep.subr.mxu0 0.0
    %1118 = vmatpush1.msra.mxu0 0.0
    %1119 = vmatprep.subr.mxu0 0.0
    %1120 = vmatpush1.msra.mxu0 0.0
    %1121 = vmatprep.subr.mxu0 0.0
    %1122 = vmatpush1.msra.mxu0 0.0
    %1123 = vmatprep.subr.mxu0 0.0
    %1124 = vmatpush1.msra.mxu0 0.0
    %1125 = vmatprep.subr.mxu0 0.0
    %1126 = vmatpush1.msra.mxu0 0.0
    %1127 = vmatprep.mubr.f32.mxu0 0.0
    %1128 = vmatmul.mubr.f32.gmra.mrb[0].mxu0 %v1052
    %v1129 = vpop.f32.mrb[0].mxu0
    %v1130 = vadd.f32 0.0, %v1129
    %v1131 = vpop.f32.mrb[0].mxu0
    %1132 = vmatprep.mubr.f32.mxu0 0.0
    %1133 = vmatmul.mubr.f32.gmra.mrb[0].mxu0 %v1054
    %v1134 = vpop.f32.mrb[0].mxu0
    %v1135 = vadd.f32 0.0, %v1134
    %v1136 = vpop.f32.mrb[0].mxu0
    %1137 = vmatprep.mubr.f32.mxu0 0.0
    %1138 = vmatmul.mubr.f32.gmra.mrb[0].mxu0 %v1056
    %v1139 = vpop.f32.mrb[0].mxu0
    %v1140 = vadd.f32 0.0, %v1139
    %v1141 = vpop.f32.mrb[0].mxu0
    %1142 = vmatprep.mubr.f32.mxu0 0.0
    %1143 = vmatmul.mubr.f32.gmra.mrb[0].mxu0 %v1058
    %v1144 = vpop.f32.mrb[0].mxu0
    %v1145 = vadd.f32 0.0, %v1144
    %v1146 = vpop.f32.mrb[0].mxu0
    %1147 = vdwg.mxu0
    %v1148 = vadd.f32 %v1022, %v1130
    %v1149 = vadd.f32 %v1027, %v1135
    %v1150 = vadd.f32 %v1032, %v1140
    %v1151 = vadd.f32 %v1037, %v1145
    %v1152 = vld [vmem:[%s4] sm:$0x1]
    %v1154 = vlaneseq
    %v1155 = vshrl.u32 %v1154, 7
    %v1156 = vsub.s32 0, %v1155
    %v1157 = vrot.slane %v1152, %v1156
    %v1159 = vadd.f32 %v1148, %v1157
    %v1160 = vadd.f32 %v1149, %v1157
    %v1161 = vadd.f32 %v1150, %v1157
    %v1162 = vadd.f32 %v1151, %v1157
    %v1167 = vcombine.high %v809, %v809
    %v1169 = vunpack.c.l.s4 1966171168
    %v1170 = vunpack.c.0.s8 %v1169
    %v1171 = vlaneseq
    %v1172 = vshrl.u32 %v1171, 7
    %v1173 = vsub.s32 %v1170, %v1172
    %v1174 = vrot.slane %v809, %v1173
    %v1176 = vunpack.c.l.s4 1966171168
    %v1177 = vunpack.c.0.s8 %v1176
    %v1178 = vlaneseq
    %v1179 = vshrl.u32 %v1178, 7
    %v1180 = vsub.s32 %v1177, %v1179
    %v1181 = vrot.slane %v1167, %v1180
    %v1182 = vcombine.high %v1174, %v1174
    %v1183 = vcombine.high %v1181, %v1181
    %v1185 = vunpack.c.l.s4 1966171168
    %v1186 = vunpack.c.0.s8 %v1185
    %v1187 = vlaneseq
    %v1188 = vshrl.u32 %v1187, 7
    %v1189 = vsub.s32 %v1186, %v1188
    %v1190 = vrot.slane %v1174, %v1189
    %v1192 = vunpack.c.l.s4 1966171168
    %v1193 = vunpack.c.0.s8 %v1192
    %v1194 = vlaneseq
    %v1195 = vshrl.u32 %v1194, 7
    %v1196 = vsub.s32 %v1193, %v1195
    %v1197 = vrot.slane %v1181, %v1196
    %v1199 = vunpack.c.l.s4 1966171168
    %v1200 = vunpack.c.0.s8 %v1199
    %v1201 = vlaneseq
    %v1202 = vshrl.u32 %v1201, 7
    %v1203 = vsub.s32 %v1200, %v1202
    %v1204 = vrot.slane %v1182, %v1203
    %v1206 = vunpack.c.l.s4 1966171168
    %v1207 = vunpack.c.0.s8 %v1206
    %v1208 = vlaneseq
    %v1209 = vshrl.u32 %v1208, 7
    %v1210 = vsub.s32 %v1207, %v1209
    %v1211 = vrot.slane %v1183, %v1210
    %v1212 = vcombine.high %v1190, %v1190
    %v1213 = vcombine.high %v1197, %v1197
    %v1214 = vcombine.high %v1204, %v1204
    %v1215 = vcombine.high %v1211, %v1211
    %v1216 = vcombine.high %v810, %v810
    %v1218 = vunpack.c.l.s4 1966171168
    %v1219 = vunpack.c.0.s8 %v1218
    %v1220 = vlaneseq
    %v1221 = vshrl.u32 %v1220, 7
    %v1222 = vsub.s32 %v1219, %v1221
    %v1223 = vrot.slane %v810, %v1222
    %v1225 = vunpack.c.l.s4 1966171168
    %v1226 = vunpack.c.0.s8 %v1225
    %v1227 = vlaneseq
    %v1228 = vshrl.u32 %v1227, 7
    %v1229 = vsub.s32 %v1226, %v1228
    %v1230 = vrot.slane %v1216, %v1229
    %v1231 = vcombine.high %v1223, %v1223
    %v1232 = vcombine.high %v1230, %v1230
    %v1234 = vunpack.c.l.s4 1966171168
    %v1235 = vunpack.c.0.s8 %v1234
    %v1236 = vlaneseq
    %v1237 = vshrl.u32 %v1236, 7
    %v1238 = vsub.s32 %v1235, %v1237
    %v1239 = vrot.slane %v1223, %v1238
    %v1241 = vunpack.c.l.s4 1966171168
    %v1242 = vunpack.c.0.s8 %v1241
    %v1243 = vlaneseq
    %v1244 = vshrl.u32 %v1243, 7
    %v1245 = vsub.s32 %v1242, %v1244
    %v1246 = vrot.slane %v1230, %v1245
    %v1248 = vunpack.c.l.s4 1966171168
    %v1249 = vunpack.c.0.s8 %v1248
    %v1250 = vlaneseq
    %v1251 = vshrl.u32 %v1250, 7
    %v1252 = vsub.s32 %v1249, %v1251
    %v1253 = vrot.slane %v1231, %v1252
    %v1255 = vunpack.c.l.s4 1966171168
    %v1256 = vunpack.c.0.s8 %v1255
    %v1257 = vlaneseq
    %v1258 = vshrl.u32 %v1257, 7
    %v1259 = vsub.s32 %v1256, %v1258
    %v1260 = vrot.slane %v1232, %v1259
    %v1261 = vcombine.high %v1239, %v1239
    %v1262 = vcombine.high %v1246, %v1246
    %v1263 = vcombine.high %v1253, %v1253
    %v1264 = vcombine.high %v1260, %v1260
    %v1265 = vcombine.high %v811, %v811
    %v1267 = vunpack.c.l.s4 1966171168
    %v1268 = vunpack.c.0.s8 %v1267
    %v1269 = vlaneseq
    %v1270 = vshrl.u32 %v1269, 7
    %v1271 = vsub.s32 %v1268, %v1270
    %v1272 = vrot.slane %v811, %v1271
    %v1274 = vunpack.c.l.s4 1966171168
    %v1275 = vunpack.c.0.s8 %v1274
    %v1276 = vlaneseq
    %v1277 = vshrl.u32 %v1276, 7
    %v1278 = vsub.s32 %v1275, %v1277
    %v1279 = vrot.slane %v1265, %v1278
    %v1280 = vcombine.high %v1272, %v1272
    %v1281 = vcombine.high %v1279, %v1279
    %v1283 = vunpack.c.l.s4 1966171168
    %v1284 = vunpack.c.0.s8 %v1283
    %v1285 = vlaneseq
    %v1286 = vshrl.u32 %v1285, 7
    %v1287 = vsub.s32 %v1284, %v1286
    %v1288 = vrot.slane %v1272, %v1287
    %v1290 = vunpack.c.l.s4 1966171168
    %v1291 = vunpack.c.0.s8 %v1290
    %v1292 = vlaneseq
    %v1293 = vshrl.u32 %v1292, 7
    %v1294 = vsub.s32 %v1291, %v1293
    %v1295 = vrot.slane %v1279, %v1294
    %v1297 = vunpack.c.l.s4 1966171168
    %v1298 = vunpack.c.0.s8 %v1297
    %v1299 = vlaneseq
    %v1300 = vshrl.u32 %v1299, 7
    %v1301 = vsub.s32 %v1298, %v1300
    %v1302 = vrot.slane %v1280, %v1301
    %v1304 = vunpack.c.l.s4 1966171168
    %v1305 = vunpack.c.0.s8 %v1304
    %v1306 = vlaneseq
    %v1307 = vshrl.u32 %v1306, 7
    %v1308 = vsub.s32 %v1305, %v1307
    %v1309 = vrot.slane %v1281, %v1308
    %v1310 = vcombine.high %v1288, %v1288
    %v1311 = vcombine.high %v1295, %v1295
    %v1312 = vcombine.high %v1302, %v1302
    %v1313 = vcombine.high %v1309, %v1309
    %v1314 = vcombine.high %v812, %v812
    %v1316 = vunpack.c.l.s4 1966171168
    %v1317 = vunpack.c.0.s8 %v1316
    %v1318 = vlaneseq
    %v1319 = vshrl.u32 %v1318, 7
    %v1320 = vsub.s32 %v1317, %v1319
    %v1321 = vrot.slane %v812, %v1320
    %v1323 = vunpack.c.l.s4 1966171168
    %v1324 = vunpack.c.0.s8 %v1323
    %v1325 = vlaneseq
    %v1326 = vshrl.u32 %v1325, 7
    %v1327 = vsub.s32 %v1324, %v1326
    %v1328 = vrot.slane %v1314, %v1327
    %v1329 = vcombine.high %v1321, %v1321
    %v1330 = vcombine.high %v1328, %v1328
    %v1332 = vunpack.c.l.s4 1966171168
    %v1333 = vunpack.c.0.s8 %v1332
    %v1334 = vlaneseq
    %v1335 = vshrl.u32 %v1334, 7
    %v1336 = vsub.s32 %v1333, %v1335
    %v1337 = vrot.slane %v1321, %v1336
    %v1339 = vunpack.c.l.s4 1966171168
    %v1340 = vunpack.c.0.s8 %v1339
    %v1341 = vlaneseq
    %v1342 = vshrl.u32 %v1341, 7
    %v1343 = vsub.s32 %v1340, %v1342
    %v1344 = vrot.slane %v1328, %v1343
    %v1346 = vunpack.c.l.s4 1966171168
    %v1347 = vunpack.c.0.s8 %v1346
    %v1348 = vlaneseq
    %v1349 = vshrl.u32 %v1348, 7
    %v1350 = vsub.s32 %v1347, %v1349
    %v1351 = vrot.slane %v1329, %v1350
    %v1353 = vunpack.c.l.s4 1966171168
    %v1354 = vunpack.c.0.s8 %v1353
    %v1355 = vlaneseq
    %v1356 = vshrl.u32 %v1355, 7
    %v1357 = vsub.s32 %v1354, %v1356
    %v1358 = vrot.slane %v1330, %v1357
    %v1359 = vcombine.high %v1337, %v1337
    %v1360 = vcombine.high %v1344, %v1344
    %v1361 = vcombine.high %v1351, %v1351
    %v1362 = vcombine.high %v1358, %v1358
    %v1363 = vlaneseq
    %v1364 = vshrl.u32 %v1363, 7
    %v1365 = vsub.s32 0, %v1364
    %v1366 = vrot.slane %v1190, %v1365
    %v1367 = vlaneseq
    %v1368 = vshrl.u32 %v1367, 7
    %v1369 = vsub.s32 0, %v1368
    %v1370 = vrot.slane %v1204, %v1369
    %v1371 = vlaneseq
    %v1372 = vshrl.u32 %v1371, 7
    %v1373 = vsub.s32 0, %v1372
    %v1374 = vrot.slane %v1212, %v1373
    %v1375 = vlaneseq
    %v1376 = vshrl.u32 %v1375, 7
    %v1377 = vsub.s32 0, %v1376
    %v1378 = vrot.slane %v1214, %v1377
    %v1379 = vlaneseq
    %v1380 = vshrl.u32 %v1379, 7
    %v1381 = vsub.s32 0, %v1380
    %v1382 = vrot.slane %v1197, %v1381
    %v1383 = vlaneseq
    %v1384 = vshrl.u32 %v1383, 7
    %v1385 = vsub.s32 0, %v1384
    %v1386 = vrot.slane %v1211, %v1385
    %v1387 = vlaneseq
    %v1388 = vshrl.u32 %v1387, 7
    %v1389 = vsub.s32 0, %v1388
    %v1390 = vrot.slane %v1213, %v1389
    %v1391 = vlaneseq
    %v1392 = vshrl.u32 %v1391, 7
    %v1393 = vsub.s32 0, %v1392
    %v1394 = vrot.slane %v1215, %v1393
    %v1395 = vlaneseq
    %v1396 = vshrl.u32 %v1395, 7
    %v1397 = vsub.s32 0, %v1396
    %v1398 = vrot.slane %v1239, %v1397
    %v1399 = vlaneseq
    %v1400 = vshrl.u32 %v1399, 7
    %v1401 = vsub.s32 0, %v1400
    %v1402 = vrot.slane %v1253, %v1401
    %v1403 = vlaneseq
    %v1404 = vshrl.u32 %v1403, 7
    %v1405 = vsub.s32 0, %v1404
    %v1406 = vrot.slane %v1261, %v1405
    %v1407 = vlaneseq
    %v1408 = vshrl.u32 %v1407, 7
    %v1409 = vsub.s32 0, %v1408
    %v1410 = vrot.slane %v1263, %v1409
    %v1411 = vlaneseq
    %v1412 = vshrl.u32 %v1411, 7
    %v1413 = vsub.s32 0, %v1412
    %v1414 = vrot.slane %v1246, %v1413
    %v1415 = vlaneseq
    %v1416 = vshrl.u32 %v1415, 7
    %v1417 = vsub.s32 0, %v1416
    %v1418 = vrot.slane %v1260, %v1417
    %v1419 = vlaneseq
    %v1420 = vshrl.u32 %v1419, 7
    %v1421 = vsub.s32 0, %v1420
    %v1422 = vrot.slane %v1262, %v1421
    %v1423 = vlaneseq
    %v1424 = vshrl.u32 %v1423, 7
    %v1425 = vsub.s32 0, %v1424
    %v1426 = vrot.slane %v1264, %v1425
    %v1427 = vlaneseq
    %v1428 = vshrl.u32 %v1427, 7
    %v1429 = vsub.s32 0, %v1428
    %v1430 = vrot.slane %v1288, %v1429
    %v1431 = vlaneseq
    %v1432 = vshrl.u32 %v1431, 7
    %v1433 = vsub.s32 0, %v1432
    %v1434 = vrot.slane %v1302, %v1433
    %v1435 = vlaneseq
    %v1436 = vshrl.u32 %v1435, 7
    %v1437 = vsub.s32 0, %v1436
    %v1438 = vrot.slane %v1310, %v1437
    %v1439 = vlaneseq
    %v1440 = vshrl.u32 %v1439, 7
    %v1441 = vsub.s32 0, %v1440
    %v1442 = vrot.slane %v1312, %v1441
    %v1443 = vlaneseq
    %v1444 = vshrl.u32 %v1443, 7
    %v1445 = vsub.s32 0, %v1444
    %v1446 = vrot.slane %v1295, %v1445
    %v1447 = vlaneseq
    %v1448 = vshrl.u32 %v1447, 7
    %v1449 = vsub.s32 0, %v1448
    %v1450 = vrot.slane %v1309, %v1449
    %v1451 = vlaneseq
    %v1452 = vshrl.u32 %v1451, 7
    %v1453 = vsub.s32 0, %v1452
    %v1454 = vrot.slane %v1311, %v1453
    %v1455 = vlaneseq
    %v1456 = vshrl.u32 %v1455, 7
    %v1457 = vsub.s32 0, %v1456
    %v1458 = vrot.slane %v1313, %v1457
    %v1459 = vlaneseq
    %v1460 = vshrl.u32 %v1459, 7
    %v1461 = vsub.s32 0, %v1460
    %v1462 = vrot.slane %v1337, %v1461
    %v1463 = vlaneseq
    %v1464 = vshrl.u32 %v1463, 7
    %v1465 = vsub.s32 0, %v1464
    %v1466 = vrot.slane %v1351, %v1465
    %v1467 = vlaneseq
    %v1468 = vshrl.u32 %v1467, 7
    %v1469 = vsub.s32 0, %v1468
    %v1470 = vrot.slane %v1359, %v1469
    %v1471 = vlaneseq
    %v1472 = vshrl.u32 %v1471, 7
    %v1473 = vsub.s32 0, %v1472
    %v1474 = vrot.slane %v1361, %v1473
    %v1475 = vlaneseq
    %v1476 = vshrl.u32 %v1475, 7
    %v1477 = vsub.s32 0, %v1476
    %v1478 = vrot.slane %v1344, %v1477
    %v1479 = vlaneseq
    %v1480 = vshrl.u32 %v1479, 7
    %v1481 = vsub.s32 0, %v1480
    %v1482 = vrot.slane %v1358, %v1481
    %v1483 = vlaneseq
    %v1484 = vshrl.u32 %v1483, 7
    %v1485 = vsub.s32 0, %v1484
    %v1486 = vrot.slane %v1360, %v1485
    %v1487 = vlaneseq
    %v1488 = vshrl.u32 %v1487, 7
    %v1489 = vsub.s32 0, %v1488
    %v1490 = vrot.slane %v1362, %v1489
    %v1523 = vadd.f32 %v1366, %v1159
    %v1524 = vadd.f32 %v1366, %v1160
    %v1525 = vadd.f32 %v1370, %v1159
    %v1526 = vadd.f32 %v1370, %v1160
    %v1527 = vadd.f32 %v1374, %v1159
    %v1528 = vadd.f32 %v1374, %v1160
    %v1529 = vadd.f32 %v1378, %v1159
    %v1530 = vadd.f32 %v1378, %v1160
    %v1531 = vadd.f32 %v1382, %v1159
    %v1532 = vadd.f32 %v1382, %v1160
    %v1533 = vadd.f32 %v1386, %v1159
    %v1534 = vadd.f32 %v1386, %v1160
    %v1535 = vadd.f32 %v1390, %v1159
    %v1536 = vadd.f32 %v1390, %v1160
    %v1537 = vadd.f32 %v1394, %v1159
    %v1538 = vadd.f32 %v1394, %v1160
    %v1539 = vadd.f32 %v1398, %v1159
    %v1540 = vadd.f32 %v1398, %v1160
    %v1541 = vadd.f32 %v1402, %v1159
    %v1542 = vadd.f32 %v1402, %v1160
    %v1543 = vadd.f32 %v1406, %v1159
    %v1544 = vadd.f32 %v1406, %v1160
    %v1545 = vadd.f32 %v1410, %v1159
    %v1546 = vadd.f32 %v1410, %v1160
    %v1547 = vadd.f32 %v1414, %v1159
    %v1548 = vadd.f32 %v1414, %v1160
    %v1549 = vadd.f32 %v1418, %v1159
    %v1550 = vadd.f32 %v1418, %v1160
    %v1551 = vadd.f32 %v1422, %v1159
    %v1552 = vadd.f32 %v1422, %v1160
    %v1553 = vadd.f32 %v1426, %v1159
    %v1554 = vadd.f32 %v1426, %v1160
    %v1555 = vadd.f32 %v1430, %v1161
    %v1556 = vadd.f32 %v1430, %v1162
    %v1557 = vadd.f32 %v1434, %v1161
    %v1558 = vadd.f32 %v1434, %v1162
    %v1559 = vadd.f32 %v1438, %v1161
    %v1560 = vadd.f32 %v1438, %v1162
    %v1561 = vadd.f32 %v1442, %v1161
    %v1562 = vadd.f32 %v1442, %v1162
    %v1563 = vadd.f32 %v1446, %v1161
    %v1564 = vadd.f32 %v1446, %v1162
    %v1565 = vadd.f32 %v1450, %v1161
    %v1566 = vadd.f32 %v1450, %v1162
    %v1567 = vadd.f32 %v1454, %v1161
    %v1568 = vadd.f32 %v1454, %v1162
    %v1569 = vadd.f32 %v1458, %v1161
    %v1570 = vadd.f32 %v1458, %v1162
    %v1571 = vadd.f32 %v1462, %v1161
    %v1572 = vadd.f32 %v1462, %v1162
    %v1573 = vadd.f32 %v1466, %v1161
    %v1574 = vadd.f32 %v1466, %v1162
    %v1575 = vadd.f32 %v1470, %v1161
    %v1576 = vadd.f32 %v1470, %v1162
    %v1577 = vadd.f32 %v1474, %v1161
    %v1578 = vadd.f32 %v1474, %v1162
    %v1579 = vadd.f32 %v1478, %v1161
    %v1580 = vadd.f32 %v1478, %v1162
    %v1581 = vadd.f32 %v1482, %v1161
    %v1582 = vadd.f32 %v1482, %v1162
    %v1583 = vadd.f32 %v1486, %v1161
    %v1584 = vadd.f32 %v1486, %v1162
    %v1585 = vadd.f32 %v1490, %v1161
    %v1586 = vadd.f32 %v1490, %v1162
    %v1587 = vmax.f32 %v1523, 0.0
    %v1588 = vmax.f32 %v1524, 0.0
    %v1589 = vmax.f32 %v1525, 0.0
    %v1590 = vmax.f32 %v1526, 0.0
    %v1591 = vmax.f32 %v1527, 0.0
    %v1592 = vmax.f32 %v1528, 0.0
    %v1593 = vmax.f32 %v1529, 0.0
    %v1594 = vmax.f32 %v1530, 0.0
    %v1595 = vmax.f32 %v1531, 0.0
    %v1596 = vmax.f32 %v1532, 0.0
    %v1597 = vmax.f32 %v1533, 0.0
    %v1598 = vmax.f32 %v1534, 0.0
    %v1599 = vmax.f32 %v1535, 0.0
    %v1600 = vmax.f32 %v1536, 0.0
    %v1601 = vmax.f32 %v1537, 0.0
    %v1602 = vmax.f32 %v1538, 0.0
    %v1603 = vmax.f32 %v1539, 0.0
    %v1604 = vmax.f32 %v1540, 0.0
    %v1605 = vmax.f32 %v1541, 0.0
    %v1606 = vmax.f32 %v1542, 0.0
    %v1607 = vmax.f32 %v1543, 0.0
    %v1608 = vmax.f32 %v1544, 0.0
    %v1609 = vmax.f32 %v1545, 0.0
    %v1610 = vmax.f32 %v1546, 0.0
    %v1611 = vmax.f32 %v1547, 0.0
    %v1612 = vmax.f32 %v1548, 0.0
    %v1613 = vmax.f32 %v1549, 0.0
    %v1614 = vmax.f32 %v1550, 0.0
    %v1615 = vmax.f32 %v1551, 0.0
    %v1616 = vmax.f32 %v1552, 0.0
    %v1617 = vmax.f32 %v1553, 0.0
    %v1618 = vmax.f32 %v1554, 0.0
    %v1619 = vmax.f32 %v1555, 0.0
    %v1620 = vmax.f32 %v1556, 0.0
    %v1621 = vmax.f32 %v1557, 0.0
    %v1622 = vmax.f32 %v1558, 0.0
    %v1623 = vmax.f32 %v1559, 0.0
    %v1624 = vmax.f32 %v1560, 0.0
    %v1625 = vmax.f32 %v1561, 0.0
    %v1626 = vmax.f32 %v1562, 0.0
    %v1627 = vmax.f32 %v1563, 0.0
    %v1628 = vmax.f32 %v1564, 0.0
    %v1629 = vmax.f32 %v1565, 0.0
    %v1630 = vmax.f32 %v1566, 0.0
    %v1631 = vmax.f32 %v1567, 0.0
    %v1632 = vmax.f32 %v1568, 0.0
    %v1633 = vmax.f32 %v1569, 0.0
    %v1634 = vmax.f32 %v1570, 0.0
    %v1635 = vmax.f32 %v1571, 0.0
    %v1636 = vmax.f32 %v1572, 0.0
    %v1637 = vmax.f32 %v1573, 0.0
    %v1638 = vmax.f32 %v1574, 0.0
    %v1639 = vmax.f32 %v1575, 0.0
    %v1640 = vmax.f32 %v1576, 0.0
    %v1641 = vmax.f32 %v1577, 0.0
    %v1642 = vmax.f32 %v1578, 0.0
    %v1643 = vmax.f32 %v1579, 0.0
    %v1644 = vmax.f32 %v1580, 0.0
    %v1645 = vmax.f32 %v1581, 0.0
    %v1646 = vmax.f32 %v1582, 0.0
    %v1647 = vmax.f32 %v1583, 0.0
    %v1648 = vmax.f32 %v1584, 0.0
    %v1649 = vmax.f32 %v1585, 0.0
    %v1650 = vmax.f32 %v1586, 0.0
    %v1651 = vld [vmem:[%s5] sm:$0xff]
    %vm1652 = vcmask 64512
    %v1654 = vsel %vm1652, %v1587, 0
    %v1657 = vsel %vm1652, %v1588, 0
    %v1660 = vsel %vm1652, %v1589, 0
    %v1663 = vsel %vm1652, %v1590, 0
    %v1666 = vsel %vm1652, %v1591, 0
    %v1669 = vsel %vm1652, %v1592, 0
    %v1672 = vsel %vm1652, %v1593, 0
    %v1675 = vsel %vm1652, %v1594, 0
    %v1678 = vsel %vm1652, %v1595, 0
    %v1681 = vsel %vm1652, %v1596, 0
    %v1684 = vsel %vm1652, %v1597, 0
    %v1687 = vsel %vm1652, %v1598, 0
    %v1690 = vsel %vm1652, %v1599, 0
    %v1693 = vsel %vm1652, %v1600, 0
    %v1696 = vsel %vm1652, %v1601, 0
    %v1699 = vsel %vm1652, %v1602, 0
    %v1702 = vsel %vm1652, %v1603, 0
    %v1705 = vsel %vm1652, %v1604, 0
    %v1708 = vsel %vm1652, %v1605, 0
    %v1711 = vsel %vm1652, %v1606, 0
    %v1714 = vsel %vm1652, %v1607, 0
    %v1717 = vsel %vm1652, %v1608, 0
    %v1720 = vsel %vm1652, %v1609, 0
    %v1723 = vsel %vm1652, %v1610, 0
    %v1726 = vsel %vm1652, %v1611, 0
    %v1729 = vsel %vm1652, %v1612, 0
    %v1732 = vsel %vm1652, %v1613, 0
    %v1735 = vsel %vm1652, %v1614, 0
    %v1738 = vsel %vm1652, %v1615, 0
    %v1741 = vsel %vm1652, %v1616, 0
    %v1744 = vsel %vm1652, %v1617, 0
    %v1747 = vsel %vm1652, %v1618, 0
    %v1750 = vsel %vm1652, %v1619, 0
    %v1753 = vsel %vm1652, %v1620, 0
    %v1756 = vsel %vm1652, %v1621, 0
    %v1759 = vsel %vm1652, %v1622, 0
    %v1762 = vsel %vm1652, %v1623, 0
    %v1765 = vsel %vm1652, %v1624, 0
    %v1768 = vsel %vm1652, %v1625, 0
    %v1771 = vsel %vm1652, %v1626, 0
    %v1774 = vsel %vm1652, %v1627, 0
    %v1777 = vsel %vm1652, %v1628, 0
    %v1780 = vsel %vm1652, %v1629, 0
    %v1783 = vsel %vm1652, %v1630, 0
    %v1786 = vsel %vm1652, %v1631, 0
    %v1789 = vsel %vm1652, %v1632, 0
    %v1792 = vsel %vm1652, %v1633, 0
    %v1795 = vsel %vm1652, %v1634, 0
    %v1798 = vsel %vm1652, %v1635, 0
    %v1801 = vsel %vm1652, %v1636, 0
    %v1804 = vsel %vm1652, %v1637, 0
    %v1807 = vsel %vm1652, %v1638, 0
    %v1810 = vsel %vm1652, %v1639, 0
    %v1813 = vsel %vm1652, %v1640, 0
    %v1816 = vsel %vm1652, %v1641, 0
    %v1819 = vsel %vm1652, %v1642, 0
    %v1822 = vsel %vm1652, %v1643, 0
    %v1825 = vsel %vm1652, %v1644, 0
    %v1828 = vsel %vm1652, %v1645, 0
    %v1831 = vsel %vm1652, %v1646, 0
    %v1834 = vsel %vm1652, %v1647, 0
    %v1837 = vsel %vm1652, %v1648, 0
    %v1840 = vsel %vm1652, %v1649, 0
    %v1843 = vsel %vm1652, %v1650, 0
    %1845 = vmatprep.subr.mxu0 0.0
    %1846 = vmatpush1.msra.mxu0 %v1651
    %1847 = vmatprep.subr.mxu0 0.0
    %1848 = vmatpush1.msra.mxu0 0.0
    %1849 = vmatprep.subr.mxu0 0.0
    %1850 = vmatpush1.msra.mxu0 0.0
    %1851 = vmatprep.subr.mxu0 0.0
    %1852 = vmatpush1.msra.mxu0 0.0
    %1853 = vmatprep.subr.mxu0 0.0
    %1854 = vmatpush1.msra.mxu0 0.0
    %1855 = vmatprep.subr.mxu0 0.0
    %1856 = vmatpush1.msra.mxu0 0.0
    %1857 = vmatprep.subr.mxu0 0.0
    %1858 = vmatpush1.msra.mxu0 0.0
    %1859 = vmatprep.subr.mxu0 0.0
    %1860 = vmatpush1.msra.mxu0 0.0
    %1861 = vmatprep.subr.mxu0 0.0
    %1862 = vmatpush1.msra.mxu0 0.0
    %1863 = vmatprep.subr.mxu0 0.0
    %1864 = vmatpush1.msra.mxu0 0.0
    %1865 = vmatprep.subr.mxu0 0.0
    %1866 = vmatpush1.msra.mxu0 0.0
    %1867 = vmatprep.subr.mxu0 0.0
    %1868 = vmatpush1.msra.mxu0 0.0
    %1869 = vmatprep.subr.mxu0 0.0
    %1870 = vmatpush1.msra.mxu0 0.0
    %1871 = vmatprep.subr.mxu0 0.0
    %1872 = vmatpush1.msra.mxu0 0.0
    %1873 = vmatprep.subr.mxu0 0.0
    %1874 = vmatpush1.msra.mxu0 0.0
    %1875 = vmatprep.subr.mxu0 0.0
    %1876 = vmatpush1.msra.mxu0 0.0
    %1877 = vmatprep.subr.mxu0 0.0
    %1878 = vmatpush1.msra.mxu0 0.0
    %1879 = vmatprep.subr.mxu0 0.0
    %1880 = vmatpush1.msra.mxu0 0.0
    %1881 = vmatprep.subr.mxu0 0.0
    %1882 = vmatpush1.msra.mxu0 0.0
    %1883 = vmatprep.subr.mxu0 0.0
    %1884 = vmatpush1.msra.mxu0 0.0
    %1885 = vmatprep.subr.mxu0 0.0
    %1886 = vmatpush1.msra.mxu0 0.0
    %1887 = vmatprep.subr.mxu0 0.0
    %1888 = vmatpush1.msra.mxu0 0.0
    %1889 = vmatprep.subr.mxu0 0.0
    %1890 = vmatpush1.msra.mxu0 0.0
    %1891 = vmatprep.subr.mxu0 0.0
    %1892 = vmatpush1.msra.mxu0 0.0
    %1893 = vmatprep.subr.mxu0 0.0
    %1894 = vmatpush1.msra.mxu0 0.0
    %1895 = vmatprep.subr.mxu0 0.0
    %1896 = vmatpush1.msra.mxu0 0.0
    %1897 = vmatprep.subr.mxu0 0.0
    %1898 = vmatpush1.msra.mxu0 0.0
    %1899 = vmatprep.subr.mxu0 0.0
    %1900 = vmatpush1.msra.mxu0 0.0
    %1901 = vmatprep.subr.mxu0 0.0
    %1902 = vmatpush1.msra.mxu0 0.0
    %1903 = vmatprep.subr.mxu0 0.0
    %1904 = vmatpush1.msra.mxu0 0.0
    %1905 = vmatprep.subr.mxu0 0.0
    %1906 = vmatpush1.msra.mxu0 0.0
    %1907 = vmatprep.subr.mxu0 0.0
    %1908 = vmatpush1.msra.mxu0 0.0
    %1909 = vmatprep.mubr.f32.mxu0 0.0
    %1910 = vmatmul.mubr.f32.gmra.mrb[0].mxu0 %v1654
    %v1911 = vpop.f32.mrb[0].mxu0
    %v1912 = vadd.f32 0.0, %v1911
    %v1913 = vpop.f32.mrb[0].mxu0
    %1914 = vmatprep.mubr.f32.mxu0 0.0
    %1915 = vmatmul.mubr.f32.gmra.mrb[0].mxu0 %v1657
    %v1916 = vpop.f32.mrb[0].mxu0
    %v1917 = vadd.f32 0.0, %v1916
    %v1918 = vpop.f32.mrb[0].mxu0
    %1919 = vmatprep.mubr.f32.mxu0 0.0
    %1920 = vmatmul.mubr.f32.gmra.mrb[0].mxu0 %v1660
    %v1921 = vpop.f32.mrb[0].mxu0
    %v1922 = vadd.f32 0.0, %v1921
    %v1923 = vpop.f32.mrb[0].mxu0
    %1924 = vmatprep.mubr.f32.mxu0 0.0
    %1925 = vmatmul.mubr.f32.gmra.mrb[0].mxu0 %v1663
    %v1926 = vpop.f32.mrb[0].mxu0
    %v1927 = vadd.f32 0.0, %v1926
    %v1928 = vpop.f32.mrb[0].mxu0
    %1929 = vmatprep.mubr.f32.mxu0 0.0
    %1930 = vmatmul.mubr.f32.gmra.mrb[0].mxu0 %v1666
    %v1931 = vpop.f32.mrb[0].mxu0
    %v1932 = vadd.f32 0.0, %v1931
    %v1933 = vpop.f32.mrb[0].mxu0
    %1934 = vmatprep.mubr.f32.mxu0 0.0
    %1935 = vmatmul.mubr.f32.gmra.mrb[0].mxu0 %v1669
    %v1936 = vpop.f32.mrb[0].mxu0
    %v1937 = vadd.f32 0.0, %v1936
    %v1938 = vpop.f32.mrb[0].mxu0
    %1939 = vmatprep.mubr.f32.mxu0 0.0
    %1940 = vmatmul.mubr.f32.gmra.mrb[0].mxu0 %v1672
    %v1941 = vpop.f32.mrb[0].mxu0
    %v1942 = vadd.f32 0.0, %v1941
    %v1943 = vpop.f32.mrb[0].mxu0
    %1944 = vmatprep.mubr.f32.mxu0 0.0
    %1945 = vmatmul.mubr.f32.gmra.mrb[0].mxu0 %v1675
    %v1946 = vpop.f32.mrb[0].mxu0
    %v1947 = vadd.f32 0.0, %v1946
    %v1948 = vpop.f32.mrb[0].mxu0
    %1949 = vmatprep.mubr.f32.mxu0 0.0
    %1950 = vmatmul.mubr.f32.gmra.mrb[0].mxu0 %v1678
    %v1951 = vpop.f32.mrb[0].mxu0
    %v1952 = vadd.f32 0.0, %v1951
    %v1953 = vpop.f32.mrb[0].mxu0
    %1954 = vmatprep.mubr.f32.mxu0 0.0
    %1955 = vmatmul.mubr.f32.gmra.mrb[0].mxu0 %v1681
    %v1956 = vpop.f32.mrb[0].mxu0
    %v1957 = vadd.f32 0.0, %v1956
    %v1958 = vpop.f32.mrb[0].mxu0
    %1959 = vmatprep.mubr.f32.mxu0 0.0
    %1960 = vmatmul.mubr.f32.gmra.mrb[0].mxu0 %v1684
    %v1961 = vpop.f32.mrb[0].mxu0
    %v1962 = vadd.f32 0.0, %v1961
    %v1963 = vpop.f32.mrb[0].mxu0
    %1964 = vmatprep.mubr.f32.mxu0 0.0
    %1965 = vmatmul.mubr.f32.gmra.mrb[0].mxu0 %v1687
    %v1966 = vpop.f32.mrb[0].mxu0
    %v1967 = vadd.f32 0.0, %v1966
    %v1968 = vpop.f32.mrb[0].mxu0
    %1969 = vmatprep.mubr.f32.mxu0 0.0
    %1970 = vmatmul.mubr.f32.gmra.mrb[0].mxu0 %v1690
    %v1971 = vpop.f32.mrb[0].mxu0
    %v1972 = vadd.f32 0.0, %v1971
    %v1973 = vpop.f32.mrb[0].mxu0
    %1974 = vmatprep.mubr.f32.mxu0 0.0
    %1975 = vmatmul.mubr.f32.gmra.mrb[0].mxu0 %v1693
    %v1976 = vpop.f32.mrb[0].mxu0
    %v1977 = vadd.f32 0.0, %v1976
    %v1978 = vpop.f32.mrb[0].mxu0
    %1979 = vmatprep.mubr.f32.mxu0 0.0
    %1980 = vmatmul.mubr.f32.gmra.mrb[0].mxu0 %v1696
    %v1981 = vpop.f32.mrb[0].mxu0
    %v1982 = vadd.f32 0.0, %v1981
    %v1983 = vpop.f32.mrb[0].mxu0
    %1984 = vmatprep.mubr.f32.mxu0 0.0
    %1985 = vmatmul.mubr.f32.gmra.mrb[0].mxu0 %v1699
    %v1986 = vpop.f32.mrb[0].mxu0
    %v1987 = vadd.f32 0.0, %v1986
    %v1988 = vpop.f32.mrb[0].mxu0
    %1989 = vmatprep.mubr.f32.mxu0 0.0
    %1990 = vmatmul.mubr.f32.gmra.mrb[0].mxu0 %v1702
    %v1991 = vpop.f32.mrb[0].mxu0
    %v1992 = vadd.f32 0.0, %v1991
    %v1993 = vpop.f32.mrb[0].mxu0
    %1994 = vmatprep.mubr.f32.mxu0 0.0
    %1995 = vmatmul.mubr.f32.gmra.mrb[0].mxu0 %v1705
    %v1996 = vpop.f32.mrb[0].mxu0
    %v1997 = vadd.f32 0.0, %v1996
    %v1998 = vpop.f32.mrb[0].mxu0
    %1999 = vmatprep.mubr.f32.mxu0 0.0
    %2000 = vmatmul.mubr.f32.gmra.mrb[0].mxu0 %v1708
    %v2001 = vpop.f32.mrb[0].mxu0
    %v2002 = vadd.f32 0.0, %v2001
    %v2003 = vpop.f32.mrb[0].mxu0
    %2004 = vmatprep.mubr.f32.mxu0 0.0
    %2005 = vmatmul.mubr.f32.gmra.mrb[0].mxu0 %v1711
    %v2006 = vpop.f32.mrb[0].mxu0
    %v2007 = vadd.f32 0.0, %v2006
    %v2008 = vpop.f32.mrb[0].mxu0
    %2009 = vmatprep.mubr.f32.mxu0 0.0
    %2010 = vmatmul.mubr.f32.gmra.mrb[0].mxu0 %v1714
    %v2011 = vpop.f32.mrb[0].mxu0
    %v2012 = vadd.f32 0.0, %v2011
    %v2013 = vpop.f32.mrb[0].mxu0
    %2014 = vmatprep.mubr.f32.mxu0 0.0
    %2015 = vmatmul.mubr.f32.gmra.mrb[0].mxu0 %v1717
    %v2016 = vpop.f32.mrb[0].mxu0
    %v2017 = vadd.f32 0.0, %v2016
    %v2018 = vpop.f32.mrb[0].mxu0
    %2019 = vmatprep.mubr.f32.mxu0 0.0
    %2020 = vmatmul.mubr.f32.gmra.mrb[0].mxu0 %v1720
    %v2021 = vpop.f32.mrb[0].mxu0
    %v2022 = vadd.f32 0.0, %v2021
    %v2023 = vpop.f32.mrb[0].mxu0
    %2024 = vmatprep.mubr.f32.mxu0 0.0
    %2025 = vmatmul.mubr.f32.gmra.mrb[0].mxu0 %v1723
    %v2026 = vpop.f32.mrb[0].mxu0
    %v2027 = vadd.f32 0.0, %v2026
    %v2028 = vpop.f32.mrb[0].mxu0
    %2029 = vmatprep.mubr.f32.mxu0 0.0
    %2030 = vmatmul.mubr.f32.gmra.mrb[0].mxu0 %v1726
    %v2031 = vpop.f32.mrb[0].mxu0
    %v2032 = vadd.f32 0.0, %v2031
    %v2033 = vpop.f32.mrb[0].mxu0
    %2034 = vmatprep.mubr.f32.mxu0 0.0
    %2035 = vmatmul.mubr.f32.gmra.mrb[0].mxu0 %v1729
    %v2036 = vpop.f32.mrb[0].mxu0
    %v2037 = vadd.f32 0.0, %v2036
    %v2038 = vpop.f32.mrb[0].mxu0
    %2039 = vmatprep.mubr.f32.mxu0 0.0
    %2040 = vmatmul.mubr.f32.gmra.mrb[0].mxu0 %v1732
    %v2041 = vpop.f32.mrb[0].mxu0
    %v2042 = vadd.f32 0.0, %v2041
    %v2043 = vpop.f32.mrb[0].mxu0
    %2044 = vmatprep.mubr.f32.mxu0 0.0
    %2045 = vmatmul.mubr.f32.gmra.mrb[0].mxu0 %v1735
    %v2046 = vpop.f32.mrb[0].mxu0
    %v2047 = vadd.f32 0.0, %v2046
    %v2048 = vpop.f32.mrb[0].mxu0
    %2049 = vmatprep.mubr.f32.mxu0 0.0
    %2050 = vmatmul.mubr.f32.gmra.mrb[0].mxu0 %v1738
    %v2051 = vpop.f32.mrb[0].mxu0
    %v2052 = vadd.f32 0.0, %v2051
    %v2053 = vpop.f32.mrb[0].mxu0
    %2054 = vmatprep.mubr.f32.mxu0 0.0
    %2055 = vmatmul.mubr.f32.gmra.mrb[0].mxu0 %v1741
    %v2056 = vpop.f32.mrb[0].mxu0
    %v2057 = vadd.f32 0.0, %v2056
    %v2058 = vpop.f32.mrb[0].mxu0
    %2059 = vmatprep.mubr.f32.mxu0 0.0
    %2060 = vmatmul.mubr.f32.gmra.mrb[0].mxu0 %v1744
    %v2061 = vpop.f32.mrb[0].mxu0
    %v2062 = vadd.f32 0.0, %v2061
    %v2063 = vpop.f32.mrb[0].mxu0
    %2064 = vmatprep.mubr.f32.mxu0 0.0
    %2065 = vmatmul.mubr.f32.gmra.mrb[0].mxu0 %v1747
    %v2066 = vpop.f32.mrb[0].mxu0
    %v2067 = vadd.f32 0.0, %v2066
    %v2068 = vpop.f32.mrb[0].mxu0
    %2069 = vmatprep.mubr.f32.mxu0 0.0
    %2070 = vmatmul.mubr.f32.gmra.mrb[0].mxu0 %v1750
    %v2071 = vpop.f32.mrb[0].mxu0
    %v2072 = vadd.f32 0.0, %v2071
    %v2073 = vpop.f32.mrb[0].mxu0
    %2074 = vmatprep.mubr.f32.mxu0 0.0
    %2075 = vmatmul.mubr.f32.gmra.mrb[0].mxu0 %v1753
    %v2076 = vpop.f32.mrb[0].mxu0
    %v2077 = vadd.f32 0.0, %v2076
    %v2078 = vpop.f32.mrb[0].mxu0
    %2079 = vmatprep.mubr.f32.mxu0 0.0
    %2080 = vmatmul.mubr.f32.gmra.mrb[0].mxu0 %v1756
    %v2081 = vpop.f32.mrb[0].mxu0
    %v2082 = vadd.f32 0.0, %v2081
    %v2083 = vpop.f32.mrb[0].mxu0
    %2084 = vmatprep.mubr.f32.mxu0 0.0
    %2085 = vmatmul.mubr.f32.gmra.mrb[0].mxu0 %v1759
    %v2086 = vpop.f32.mrb[0].mxu0
    %v2087 = vadd.f32 0.0, %v2086
    %v2088 = vpop.f32.mrb[0].mxu0
    %2089 = vmatprep.mubr.f32.mxu0 0.0
    %2090 = vmatmul.mubr.f32.gmra.mrb[0].mxu0 %v1762
    %v2091 = vpop.f32.mrb[0].mxu0
    %v2092 = vadd.f32 0.0, %v2091
    %v2093 = vpop.f32.mrb[0].mxu0
    %2094 = vmatprep.mubr.f32.mxu0 0.0
    %2095 = vmatmul.mubr.f32.gmra.mrb[0].mxu0 %v1765
    %v2096 = vpop.f32.mrb[0].mxu0
    %v2097 = vadd.f32 0.0, %v2096
    %v2098 = vpop.f32.mrb[0].mxu0
    %2099 = vmatprep.mubr.f32.mxu0 0.0
    %2100 = vmatmul.mubr.f32.gmra.mrb[0].mxu0 %v1768
    %v2101 = vpop.f32.mrb[0].mxu0
    %v2102 = vadd.f32 0.0, %v2101
    %v2103 = vpop.f32.mrb[0].mxu0
    %2104 = vmatprep.mubr.f32.mxu0 0.0
    %2105 = vmatmul.mubr.f32.gmra.mrb[0].mxu0 %v1771
    %v2106 = vpop.f32.mrb[0].mxu0
    %v2107 = vadd.f32 0.0, %v2106
    %v2108 = vpop.f32.mrb[0].mxu0
    %2109 = vmatprep.mubr.f32.mxu0 0.0
    %2110 = vmatmul.mubr.f32.gmra.mrb[0].mxu0 %v1774
    %v2111 = vpop.f32.mrb[0].mxu0
    %v2112 = vadd.f32 0.0, %v2111
    %v2113 = vpop.f32.mrb[0].mxu0
    %2114 = vmatprep.mubr.f32.mxu0 0.0
    %2115 = vmatmul.mubr.f32.gmra.mrb[0].mxu0 %v1777
    %v2116 = vpop.f32.mrb[0].mxu0
    %v2117 = vadd.f32 0.0, %v2116
    %v2118 = vpop.f32.mrb[0].mxu0
    %2119 = vmatprep.mubr.f32.mxu0 0.0
    %2120 = vmatmul.mubr.f32.gmra.mrb[0].mxu0 %v1780
    %v2121 = vpop.f32.mrb[0].mxu0
    %v2122 = vadd.f32 0.0, %v2121
    %v2123 = vpop.f32.mrb[0].mxu0
    %2124 = vmatprep.mubr.f32.mxu0 0.0
    %2125 = vmatmul.mubr.f32.gmra.mrb[0].mxu0 %v1783
    %v2126 = vpop.f32.mrb[0].mxu0
    %v2127 = vadd.f32 0.0, %v2126
    %v2128 = vpop.f32.mrb[0].mxu0
    %2129 = vmatprep.mubr.f32.mxu0 0.0
    %2130 = vmatmul.mubr.f32.gmra.mrb[0].mxu0 %v1786
    %v2131 = vpop.f32.mrb[0].mxu0
    %v2132 = vadd.f32 0.0, %v2131
    %v2133 = vpop.f32.mrb[0].mxu0
    %2134 = vmatprep.mubr.f32.mxu0 0.0
    %2135 = vmatmul.mubr.f32.gmra.mrb[0].mxu0 %v1789
    %v2136 = vpop.f32.mrb[0].mxu0
    %v2137 = vadd.f32 0.0, %v2136
    %v2138 = vpop.f32.mrb[0].mxu0
    %2139 = vmatprep.mubr.f32.mxu0 0.0
    %2140 = vmatmul.mubr.f32.gmra.mrb[0].mxu0 %v1792
    %v2141 = vpop.f32.mrb[0].mxu0
    %v2142 = vadd.f32 0.0, %v2141
    %v2143 = vpop.f32.mrb[0].mxu0
    %2144 = vmatprep.mubr.f32.mxu0 0.0
    %2145 = vmatmul.mubr.f32.gmra.mrb[0].mxu0 %v1795
    %v2146 = vpop.f32.mrb[0].mxu0
    %v2147 = vadd.f32 0.0, %v2146
    %v2148 = vpop.f32.mrb[0].mxu0
    %2149 = vmatprep.mubr.f32.mxu0 0.0
    %2150 = vmatmul.mubr.f32.gmra.mrb[0].mxu0 %v1798
    %v2151 = vpop.f32.mrb[0].mxu0
    %v2152 = vadd.f32 0.0, %v2151
    %v2153 = vpop.f32.mrb[0].mxu0
    %2154 = vmatprep.mubr.f32.mxu0 0.0
    %2155 = vmatmul.mubr.f32.gmra.mrb[0].mxu0 %v1801
    %v2156 = vpop.f32.mrb[0].mxu0
    %v2157 = vadd.f32 0.0, %v2156
    %v2158 = vpop.f32.mrb[0].mxu0
    %2159 = vmatprep.mubr.f32.mxu0 0.0
    %2160 = vmatmul.mubr.f32.gmra.mrb[0].mxu0 %v1804
    %v2161 = vpop.f32.mrb[0].mxu0
    %v2162 = vadd.f32 0.0, %v2161
    %v2163 = vpop.f32.mrb[0].mxu0
    %2164 = vmatprep.mubr.f32.mxu0 0.0
    %2165 = vmatmul.mubr.f32.gmra.mrb[0].mxu0 %v1807
    %v2166 = vpop.f32.mrb[0].mxu0
    %v2167 = vadd.f32 0.0, %v2166
    %v2168 = vpop.f32.mrb[0].mxu0
    %2169 = vmatprep.mubr.f32.mxu0 0.0
    %2170 = vmatmul.mubr.f32.gmra.mrb[0].mxu0 %v1810
    %v2171 = vpop.f32.mrb[0].mxu0
    %v2172 = vadd.f32 0.0, %v2171
    %v2173 = vpop.f32.mrb[0].mxu0
    %2174 = vmatprep.mubr.f32.mxu0 0.0
    %2175 = vmatmul.mubr.f32.gmra.mrb[0].mxu0 %v1813
    %v2176 = vpop.f32.mrb[0].mxu0
    %v2177 = vadd.f32 0.0, %v2176
    %v2178 = vpop.f32.mrb[0].mxu0
    %2179 = vmatprep.mubr.f32.mxu0 0.0
    %2180 = vmatmul.mubr.f32.gmra.mrb[0].mxu0 %v1816
    %v2181 = vpop.f32.mrb[0].mxu0
    %v2182 = vadd.f32 0.0, %v2181
    %v2183 = vpop.f32.mrb[0].mxu0
    %2184 = vmatprep.mubr.f32.mxu0 0.0
    %2185 = vmatmul.mubr.f32.gmra.mrb[0].mxu0 %v1819
    %v2186 = vpop.f32.mrb[0].mxu0
    %v2187 = vadd.f32 0.0, %v2186
    %v2188 = vpop.f32.mrb[0].mxu0
    %2189 = vmatprep.mubr.f32.mxu0 0.0
    %2190 = vmatmul.mubr.f32.gmra.mrb[0].mxu0 %v1822
    %v2191 = vpop.f32.mrb[0].mxu0
    %v2192 = vadd.f32 0.0, %v2191
    %v2193 = vpop.f32.mrb[0].mxu0
    %2194 = vmatprep.mubr.f32.mxu0 0.0
    %2195 = vmatmul.mubr.f32.gmra.mrb[0].mxu0 %v1825
    %v2196 = vpop.f32.mrb[0].mxu0
    %v2197 = vadd.f32 0.0, %v2196
    %v2198 = vpop.f32.mrb[0].mxu0
    %2199 = vmatprep.mubr.f32.mxu0 0.0
    %2200 = vmatmul.mubr.f32.gmra.mrb[0].mxu0 %v1828
    %v2201 = vpop.f32.mrb[0].mxu0
    %v2202 = vadd.f32 0.0, %v2201
    %v2203 = vpop.f32.mrb[0].mxu0
    %2204 = vmatprep.mubr.f32.mxu0 0.0
    %2205 = vmatmul.mubr.f32.gmra.mrb[0].mxu0 %v1831
    %v2206 = vpop.f32.mrb[0].mxu0
    %v2207 = vadd.f32 0.0, %v2206
    %v2208 = vpop.f32.mrb[0].mxu0
    %2209 = vmatprep.mubr.f32.mxu0 0.0
    %2210 = vmatmul.mubr.f32.gmra.mrb[0].mxu0 %v1834
    %v2211 = vpop.f32.mrb[0].mxu0
    %v2212 = vadd.f32 0.0, %v2211
    %v2213 = vpop.f32.mrb[0].mxu0
    %2214 = vmatprep.mubr.f32.mxu0 0.0
    %2215 = vmatmul.mubr.f32.gmra.mrb[0].mxu0 %v1837
    %v2216 = vpop.f32.mrb[0].mxu0
    %v2217 = vadd.f32 0.0, %v2216
    %v2218 = vpop.f32.mrb[0].mxu0
    %2219 = vmatprep.mubr.f32.mxu0 0.0
    %2220 = vmatmul.mubr.f32.gmra.mrb[0].mxu0 %v1840
    %v2221 = vpop.f32.mrb[0].mxu0
    %v2222 = vadd.f32 0.0, %v2221
    %v2223 = vpop.f32.mrb[0].mxu0
    %2224 = vmatprep.mubr.f32.mxu0 0.0
    %2225 = vmatmul.mubr.f32.gmra.mrb[0].mxu0 %v1843
    %v2226 = vpop.f32.mrb[0].mxu0
    %v2227 = vadd.f32 0.0, %v2226
    %v2228 = vpop.f32.mrb[0].mxu0
    %2229 = vdwg.mxu0
    %2230 = vxpose.xlu0.b32.start [1/16] %v1912, 128
    %2231 = vxpose.xlu0.b32.cont [2/16] %v1917, 128
    %2232 = vxpose.xlu0.b32.cont [3/16] %v1922, 128
    %2233 = vxpose.xlu0.b32.cont [4/16] %v1927, 128
    %2234 = vxpose.xlu0.b32.cont [5/16] %v1932, 128
    %2235 = vxpose.xlu0.b32.cont [6/16] %v1937, 128
    %2236 = vxpose.xlu0.b32.cont [7/16] %v1942, 128
    %2237 = vxpose.xlu0.b32.cont [8/16] %v1947, 128
    %2238 = vxpose.xlu0.b32.cont [9/16] %v1952, 128
    %2239 = vxpose.xlu0.b32.cont [10/16] %v1957, 128
    %2240 = vxpose.xlu0.b32.cont [11/16] %v1962, 128
    %2241 = vxpose.xlu0.b32.cont [12/16] %v1967, 128
    %2242 = vxpose.xlu0.b32.cont [13/16] %v1972, 128
    %2243 = vxpose.xlu0.b32.cont [14/16] %v1977, 128
    %2244 = vxpose.xlu0.b32.cont [15/16] %v1982, 128
    %2245 = vxpose.xlu0.b32.end [16/16] %v1987, 128
    %v2246 = vpop.trf.xlu0
    %v2247 = vpop.trf.xlu0
    %v2248 = vpop.trf.xlu0
    %v2249 = vpop.trf.xlu0
    %v2250 = vpop.trf.xlu0
    %v2251 = vpop.trf.xlu0
    %v2252 = vpop.trf.xlu0
    %v2253 = vpop.trf.xlu0
    %v2254 = vpop.trf.xlu0
    %v2255 = vpop.trf.xlu0
    %v2256 = vpop.trf.xlu0
    %v2257 = vpop.trf.xlu0
    %v2258 = vpop.trf.xlu0
    %v2259 = vpop.trf.xlu0
    %v2260 = vpop.trf.xlu0
    %v2261 = vpop.trf.xlu0
    %2262 = vxpose.xlu0.b32.start [1/16] %v1992, 128
    %2263 = vxpose.xlu0.b32.cont [2/16] %v1997, 128
    %2264 = vxpose.xlu0.b32.cont [3/16] %v2002, 128
    %2265 = vxpose.xlu0.b32.cont [4/16] %v2007, 128
    %2266 = vxpose.xlu0.b32.cont [5/16] %v2012, 128
    %2267 = vxpose.xlu0.b32.cont [6/16] %v2017, 128
    %2268 = vxpose.xlu0.b32.cont [7/16] %v2022, 128
    %2269 = vxpose.xlu0.b32.cont [8/16] %v2027, 128
    %2270 = vxpose.xlu0.b32.cont [9/16] %v2032, 128
    %2271 = vxpose.xlu0.b32.cont [10/16] %v2037, 128
    %2272 = vxpose.xlu0.b32.cont [11/16] %v2042, 128
    %2273 = vxpose.xlu0.b32.cont [12/16] %v2047, 128
    %2274 = vxpose.xlu0.b32.cont [13/16] %v2052, 128
    %2275 = vxpose.xlu0.b32.cont [14/16] %v2057, 128
    %2276 = vxpose.xlu0.b32.cont [15/16] %v2062, 128
    %2277 = vxpose.xlu0.b32.end [16/16] %v2067, 128
    %v2278 = vpop.trf.xlu0
    %v2279 = vpop.trf.xlu0
    %v2280 = vpop.trf.xlu0
    %v2281 = vpop.trf.xlu0
    %v2282 = vpop.trf.xlu0
    %v2283 = vpop.trf.xlu0
    %v2284 = vpop.trf.xlu0
    %v2285 = vpop.trf.xlu0
    %v2286 = vpop.trf.xlu0
    %v2287 = vpop.trf.xlu0
    %v2288 = vpop.trf.xlu0
    %v2289 = vpop.trf.xlu0
    %v2290 = vpop.trf.xlu0
    %v2291 = vpop.trf.xlu0
    %v2292 = vpop.trf.xlu0
    %v2293 = vpop.trf.xlu0
    %2294 = vxpose.xlu0.b32.start [1/16] %v2072, 128
    %2295 = vxpose.xlu0.b32.cont [2/16] %v2077, 128
    %2296 = vxpose.xlu0.b32.cont [3/16] %v2082, 128
    %2297 = vxpose.xlu0.b32.cont [4/16] %v2087, 128
    %2298 = vxpose.xlu0.b32.cont [5/16] %v2092, 128
    %2299 = vxpose.xlu0.b32.cont [6/16] %v2097, 128
    %2300 = vxpose.xlu0.b32.cont [7/16] %v2102, 128
    %2301 = vxpose.xlu0.b32.cont [8/16] %v2107, 128
    %2302 = vxpose.xlu0.b32.cont [9/16] %v2112, 128
    %2303 = vxpose.xlu0.b32.cont [10/16] %v2117, 128
    %2304 = vxpose.xlu0.b32.cont [11/16] %v2122, 128
    %2305 = vxpose.xlu0.b32.cont [12/16] %v2127, 128
    %2306 = vxpose.xlu0.b32.cont [13/16] %v2132, 128
    %2307 = vxpose.xlu0.b32.cont [14/16] %v2137, 128
    %2308 = vxpose.xlu0.b32.cont [15/16] %v2142, 128
    %2309 = vxpose.xlu0.b32.end [16/16] %v2147, 128
    %v2310 = vpop.trf.xlu0
    %v2311 = vpop.trf.xlu0
    %v2312 = vpop.trf.xlu0
    %v2313 = vpop.trf.xlu0
    %v2314 = vpop.trf.xlu0
    %v2315 = vpop.trf.xlu0
    %v2316 = vpop.trf.xlu0
    %v2317 = vpop.trf.xlu0
    %v2318 = vpop.trf.xlu0
    %v2319 = vpop.trf.xlu0
    %v2320 = vpop.trf.xlu0
    %v2321 = vpop.trf.xlu0
    %v2322 = vpop.trf.xlu0
    %v2323 = vpop.trf.xlu0
    %v2324 = vpop.trf.xlu0
    %v2325 = vpop.trf.xlu0
    %2326 = vxpose.xlu0.b32.start [1/16] %v2152, 128
    %2327 = vxpose.xlu0.b32.cont [2/16] %v2157, 128
    %2328 = vxpose.xlu0.b32.cont [3/16] %v2162, 128
    %2329 = vxpose.xlu0.b32.cont [4/16] %v2167, 128
    %2330 = vxpose.xlu0.b32.cont [5/16] %v2172, 128
    %2331 = vxpose.xlu0.b32.cont [6/16] %v2177, 128
    %2332 = vxpose.xlu0.b32.cont [7/16] %v2182, 128
    %2333 = vxpose.xlu0.b32.cont [8/16] %v2187, 128
    %2334 = vxpose.xlu0.b32.cont [9/16] %v2192, 128
    %2335 = vxpose.xlu0.b32.cont [10/16] %v2197, 128
    %2336 = vxpose.xlu0.b32.cont [11/16] %v2202, 128
    %2337 = vxpose.xlu0.b32.cont [12/16] %v2207, 128
    %2338 = vxpose.xlu0.b32.cont [13/16] %v2212, 128
    %2339 = vxpose.xlu0.b32.cont [14/16] %v2217, 128
    %2340 = vxpose.xlu0.b32.cont [15/16] %v2222, 128
    %2341 = vxpose.xlu0.b32.end [16/16] %v2227, 128
    %v2342 = vpop.trf.xlu0
    %v2343 = vpop.trf.xlu0
    %v2344 = vpop.trf.xlu0
    %v2345 = vpop.trf.xlu0
    %v2346 = vpop.trf.xlu0
    %v2347 = vpop.trf.xlu0
    %v2348 = vpop.trf.xlu0
    %v2349 = vpop.trf.xlu0
    %v2350 = vpop.trf.xlu0
    %v2351 = vpop.trf.xlu0
    %v2352 = vpop.trf.xlu0
    %v2353 = vpop.trf.xlu0
    %v2354 = vpop.trf.xlu0
    %v2355 = vpop.trf.xlu0
    %v2356 = vpop.trf.xlu0
    %v2357 = vpop.trf.xlu0
    %v2358 = vld [vmem:[%s6] sm:$0xff]
    %2360 = vset.pattern.permute.xlu0 0
    %2361 = vperm.xlu0 %2360, %v2358
    %v2362 = vpop.permute.xlu0 %2361
    %v2364 = vadd.f32 %v2246, %v2362
    %v2365 = vadd.f32 %v2278, %v2362
    %v2366 = vadd.f32 %v2310, %v2362
    %v2367 = vadd.f32 %v2342, %v2362
    %v2368 = vsub.f32 0.0, %v2364
    %v2369 = vsub.f32 0.0, %v2365
    %v2370 = vsub.f32 0.0, %v2366
    %v2371 = vsub.f32 0.0, %v2367
    %v2372 = vmul.f32 %v2368, 1.442695
    %v2373 = vpow.pop %v2372
    %v2374 = vmul.f32 %v2369, 1.442695
    %v2375 = vpow.pop %v2374
    %v2376 = vmul.f32 %v2370, 1.442695
    %v2377 = vpow.pop %v2376
    %v2378 = vmul.f32 %v2371, 1.442695
    %v2379 = vpow.pop %v2378
    %v2380 = vadd.f32 %v2373, 1.0
    %v2381 = vadd.f32 %v2375, 1.0
    %v2382 = vadd.f32 %v2377, 1.0
    %v2383 = vadd.f32 %v2379, 1.0
    %v2384 = vrcp.pop %v2380
    %v2385 = vmul.f32 1.0, %v2384
    %v2386 = vrcp.pop %v2381
    %v2387 = vmul.f32 1.0, %v2386
    %v2388 = vrcp.pop %v2382
    %v2389 = vmul.f32 1.0, %v2388
    %v2390 = vrcp.pop %v2383
    %v2391 = vmul.f32 1.0, %v2390
    %2392 = vst [vmem:[#allocation8] sm:$0xff] %v2385
    %2393 = vst [vmem:[#allocation8 + $0x8] sm:$0xff] %v2387
    %2394 = vst [vmem:[#allocation8 + $0x10] sm:$0xff] %v2389
    %2395 = vst [vmem:[#allocation8 + $0x18] sm:$0xff] %v2391
    // Predicated region
    $region42: #{tpu_custom_call.1} parent=1 // pred_check
      _
    $region43: #{tpu_custom_call.1} parent=1 // pred_check_branch
      %2397 = sbr.rel (0) target = $region45
    $region44: #{tpu_custom_call.1} parent=1 // pred_region
      %s2399 = ssub.s32 512, 512
      %2400 = vsyncadd [#allocation4], %s2399
      %s2401 = sshll.u32 [#allocation8], 4
      %s2402 = int_to_ptr.vmem [resolvable:$true] %s2401
      %2407 = dma.vmem_to_hbm [thread:$0]  %s2402, 512, %s7, [#allocation4], 256, 256, 16
    $region45: #{tpu_custom_call.1} parent=1 // pred_fallthru
      _
    // Predicated region
    $region46: #{tpu_custom_call.1} parent=1 // pred_check
      _
    $region47: #{tpu_custom_call.1} parent=1 // pred_check_branch
      %2409 = sbr.rel (0) target = $region49
    $region48: #{tpu_custom_call.1} parent=1 // pred_region
      %2410 = dma.done [#allocation4], 512
    $region49: #{tpu_custom_call.1} parent=1 // pred_fallthru
      _
    %2411 = vsyncpa [#allocation3], 1
    %2412 = vsyncpa [#allocation6], 1
    %2413 = vsyncpa [#allocation4], 1

</llo_original>
